<compile_context>
chip_gen: v7x
topology: tpu7x:2x2x1
jax: 0.10.0
libtpu: 0.0.40
codegen_flags: <defaults>
</compile_context>

<pallas_src>
import jax
import jax.numpy as jnp
from jax.experimental import pallas as pl
from jax.experimental.pallas import tpu as pltpu


def _round_up(x, n):
    return ((x + n - 1) // n) * n


def _tensorcores_per_chip():
    """Best-effort TensorCore count addressable by one pallas_call on this chip."""
    try:
        kind = jax.devices()[0].device_kind.lower()
    except Exception:
        return 1
    # v7x exposes 2 TCs/chip (sharded via the "parallel" grid axis); v4/v5p megacore
    # also splits a parallel axis across 2 cores. v5e/v6e are single-TC.
    if "v7" in kind or "v4" in kind or "v5p" in kind:
        return 2
    return 1


def _make_mlp_kernel(true_b, tile_b):
    """Kernel for one batch tile of: Linear(d, m) -> ReLU -> Linear(m, 1).

    x_ref : (tile_b, d) VMEM  (streamed batch tile; f32 or bf16)
    w1_ref: (d, m)      VMEM  (resident, constant index_map; f32 or bf16)
    b1_ref: (1, m)      VMEM  (resident, f32)
    w2_ref: (1, m)      VMEM  (resident, fc2 weight as a lane-major row, f32)
    b2_ref: (1,)        SMEM  (scalar fc2 bias)
    o_ref : (tile_b, 1) VMEM  (f32)
    """
    ragged = (true_b % tile_b) != 0

    def kernel(x_ref, w1_ref, b1_ref, w2_ref, b2_ref, o_ref):
        # fc1 on the MXU with f32 accumulation; bias + ReLU on the VPU (f32, v5e-safe).
        h = jnp.dot(x_ref[...], w1_ref[...], preferred_element_type=jnp.float32)
        h = jnp.maximum(h + b1_ref[...], 0.0)
        # fc2: N=1, so avoid the MXU entirely — VPU multiply + XLU lane reduction.
        o = jnp.sum(h * w2_ref[...], axis=-1, keepdims=True) + b2_ref[0]
        if ragged:
            # Last grid step overhangs B: Pallas clips the writeback DMA, but mask the
            # value anyway so stale-VMEM garbage (NaN/Inf) never reaches the store.
            row = (pl.program_id(0) * tile_b
                   + jax.lax.broadcasted_iota(jnp.int32, (tile_b, 1), 0))
            o = jnp.where(row < true_b, o, 0.0)
        o_ref[...] = o.astype(o_ref.dtype)

    return kernel


def deployed_network_forward(x, w1, b1, w2, b2, *, max_tile_b=2048,
                             min_grid_steps=None):
    """x: (B, d); w1: (d, m) (= fc1.weight.T); b1: (m,); w2: (m, 1) (= fc2.weight.T);
    b2: (1,). Returns (B, 1) float32. x / w1 may be bf16 (f32 accumulation)."""
    B, d = x.shape
    m = w1.shape[1]

    if min_grid_steps is None:
        min_grid_steps = _tensorcores_per_chip()

    # As few grid steps as possible (each costs ~0.35 us fixed overhead), but at least
    # `min_grid_steps` so the "parallel" batch axis can shard across TensorCores on
    # multi-TC chips. tile_b is a multiple of 8 (sublane rule) and capped so the
    # hidden activation / x tile stay small even when spilled to VMEM scratch.
    tile_b = _round_up(pl.cdiv(B, max(min_grid_steps, 1)), 8)
    tile_b = max(8, min(tile_b, max_tile_b))
    grid = (pl.cdiv(B, tile_b),)

    b1_row = b1.reshape(1, m).astype(jnp.float32)
    w2_row = w2.reshape(1, m).astype(jnp.float32)   # fc2 weight as a lane-major row
    b2_s = b2.reshape(1).astype(jnp.float32)

    flops = 2 * B * d * m + 3 * B * m
    bytes_accessed = (B * d * x.dtype.itemsize + d * m * w1.dtype.itemsize
                      + 4 * (2 * m + 1 + B))

    out = pl.pallas_call(
        _make_mlp_kernel(B, tile_b),
        out_shape=jax.ShapeDtypeStruct((B, 1), jnp.float32),
        grid=grid,
        in_specs=[
            # Streamed batch tiles (edge block clipped by Pallas when B % tile_b != 0).
            pl.BlockSpec((tile_b, d), lambda i: (i, 0)),
            # Constant index_maps -> weights/biases stay VMEM-resident (no re-DMA).
            pl.BlockSpec((d, m), lambda i: (0, 0)),
            pl.BlockSpec((1, m), lambda i: (0, 0)),
            pl.BlockSpec((1, m), lambda i: (0, 0)),
            # Scalar fc2 bias lives in SMEM.
            pl.BlockSpec(memory_space=pltpu.MemorySpace.SMEM),
        ],
        out_specs=pl.BlockSpec((tile_b, 1), lambda i: (i, 0)),
        compiler_params=pltpu.CompilerParams(
            # Independent batch tiles: shard across TensorCores where available (v7x).
            dimension_semantics=("parallel",),
        ),
        cost_estimate=pl.CostEstimate(
            flops=flops, transcendentals=0, bytes_accessed=bytes_accessed
        ),
    )(x, w1, b1_row, w2_row, b2_s)

    return out


if __name__ == "__main__":
    d, m = 32, 64

    key = jax.random.PRNGKey(0)
    kx, kw1, kw2 = jax.random.split(key, 3)

    # Deterministic init mirroring nn.init.normal_(std=0.1) / zeros_.
    w1 = 0.1 * jax.random.normal(kw1, (d, m), dtype=jnp.float32)   # fc1.weight.T
    b1 = jnp.zeros((m,), dtype=jnp.float32)                        # fc1.bias
    w2 = 0.1 * jax.random.normal(kw2, (m, 1), dtype=jnp.float32)   # fc2.weight.T
    b2 = jnp.zeros((1,), dtype=jnp.float32)                        # fc2.bias

    def reference(xb):
        return jnp.maximum(xb @ w1 + b1.reshape(1, m), 0.0) @ w2 + b2.reshape(1, 1)

    # Tile-aligned batch: single grid step on 1-TC chips, 2 sharded steps on v7x.
    B0 = 1024
    x0 = jax.random.normal(kx, (B0, d), dtype=jnp.float32)
    out0 = deployed_network_forward(x0, w1, b1, w2, b2)
    jax.block_until_ready(out0)
    assert out0.shape == (B0, 1)
    assert jnp.allclose(out0, reference(x0), atol=1e-4, rtol=1e-4)

    # Ragged batch (no jnp.pad copy): exercises edge-block clipping + in-kernel mask,
    # with min_grid_steps=2 to also exercise the multi-step "parallel" grid path.
    B1 = 1003
    x1 = jax.random.normal(kx, (B1, d), dtype=jnp.float32)
    out1 = deployed_network_forward(x1, w1, b1, w2, b2, min_grid_steps=2)
    jax.block_until_ready(out1)
    assert out1.shape == (B1, 1)
    assert jnp.allclose(out1, reference(x1), atol=1e-4, rtol=1e-4)

    print("KERNEL_OK")
</pallas_src>

<mosaic_0001>
module attributes {stable_mosaic.version = 11 : i64} {
  func.func @kernel(%arg0: i32, %arg1: memref<1024x32xf32, #tpu.memory_space<vmem>>, %arg2: memref<32x64xf32, #tpu.memory_space<vmem>>, %arg3: memref<1x64xf32, #tpu.memory_space<vmem>>, %arg4: memref<1x64xf32, #tpu.memory_space<vmem>>, %arg5: memref<1xf32, #tpu.memory_space<smem>>, %arg6: memref<1024x1xf32, #tpu.memory_space<vmem>>) attributes {dimension_semantics = [#tpu.dimension_semantics<parallel>], iteration_bounds = array<i64: 1>, scalar_prefetch = 0 : i64, scratch_operands = 0 : i64, tpu.core_type = #tpu.core_type<tc>, window_params = [{transform_indices = @transform_0, window_bounds = array<i64: 1024, 32>}, {pipeline_mode = #tpu.pipeline_mode<synchronous>, transform_indices = @transform_1, window_bounds = array<i64: 32, 64>}, {pipeline_mode = #tpu.pipeline_mode<synchronous>, transform_indices = @transform_2, window_bounds = array<i64: 1, 64>}, {pipeline_mode = #tpu.pipeline_mode<synchronous>, transform_indices = @transform_3, window_bounds = array<i64: 1, 64>}, {transform_indices = @transform_4, window_bounds = array<i64: 1>}, {transform_indices = @transform_5, window_bounds = array<i64: 1024, 1>}]} {
    %c0 = arith.constant 0 : index
    %c0_0 = arith.constant 0 : index
    %0 = vector.load %arg1[%c0, %c0_0] : memref<1024x32xf32, #tpu.memory_space<vmem>>, vector<1024x32xf32>
    %c0_1 = arith.constant 0 : index
    %c0_2 = arith.constant 0 : index
    %1 = vector.load %arg2[%c0_1, %c0_2] : memref<32x64xf32, #tpu.memory_space<vmem>>, vector<32x64xf32>
    %cst = arith.constant dense<0.000000e+00> : vector<1024x64xf32>
    %2 = tpu.matmul %0, %1, %cst {dimension_numbers = #tpu.dot_dimension_numbers<[1], [0], [0], [1], [0, 0, 1, 1], [], []>} : vector<1024x32xf32>, vector<32x64xf32>, vector<1024x64xf32> -> vector<1024x64xf32>
    %c0_3 = arith.constant 0 : index
    %c0_4 = arith.constant 0 : index
    %3 = vector.load %arg3[%c0_3, %c0_4] : memref<1x64xf32, #tpu.memory_space<vmem>>, vector<1x64xf32>
    %4 = vector.broadcast %3 : vector<1x64xf32> to vector<1024x64xf32>
    %5 = arith.addf %2, %4 : vector<1024x64xf32>
    %cst_5 = arith.constant 0.000000e+00 : f32
    %6 = vector.broadcast %cst_5 : f32 to vector<1024x64xf32>
    %7 = arith.maximumf %5, %6 : vector<1024x64xf32>
    %c0_6 = arith.constant 0 : index
    %c0_7 = arith.constant 0 : index
    %8 = vector.load %arg4[%c0_6, %c0_7] : memref<1x64xf32, #tpu.memory_space<vmem>>, vector<1x64xf32>
    %9 = vector.broadcast %8 : vector<1x64xf32> to vector<1024x64xf32>
    %10 = arith.mulf %7, %9 : vector<1024x64xf32>
    %cst_8 = arith.constant dense<0.000000e+00> : vector<1024xf32>
    %11 = vector.multi_reduction <add>, %10, %cst_8 [1] : vector<1024x64xf32> to vector<1024xf32>
    %12 = vector.shape_cast %11 : vector<1024xf32> to vector<1024x1xf32>
    %c0_9 = arith.constant 0 : index
    %13 = memref.load %arg5[%c0_9] : memref<1xf32, #tpu.memory_space<smem>>
    %14 = vector.broadcast %13 : f32 to vector<1024x1xf32>
    %15 = arith.addf %12, %14 : vector<1024x1xf32>
    %c0_10 = arith.constant 0 : index
    %c0_11 = arith.constant 0 : index
    %16 = vector.load %arg6[%c0_10, %c0_11] : memref<1024x1xf32, #tpu.memory_space<vmem>>, vector<1024x1xf32>
    tpu.vector_store %arg6[%c0_10, %c0_11], %15 {strides = array<i32>} : memref<1024x1xf32, #tpu.memory_space<vmem>>, vector<1024x1xf32>,
    return
  }
  func.func @transform_0(%arg0: i32) -> (i32, i32) {
    %c0_i32 = arith.constant 0 : i32
    %c0_i32_0 = arith.constant 0 : i32
    return %arg0, %c0_i32 : i32, i32
  }
  func.func @transform_1(%arg0: i32) -> (i32, i32) {
    %c0_i32 = arith.constant 0 : i32
    %c0_i32_0 = arith.constant 0 : i32
    %c0_i32_1 = arith.constant 0 : i32
    return %c0_i32, %c0_i32_0 : i32, i32
  }
  func.func @transform_2(%arg0: i32) -> (i32, i32) {
    %c0_i32 = arith.constant 0 : i32
    %c0_i32_0 = arith.constant 0 : i32
    %c0_i32_1 = arith.constant 0 : i32
    return %c0_i32, %c0_i32_0 : i32, i32
  }
  func.func @transform_3(%arg0: i32) -> (i32, i32) {
    %c0_i32 = arith.constant 0 : i32
    %c0_i32_0 = arith.constant 0 : i32
    %c0_i32_1 = arith.constant 0 : i32
    return %c0_i32, %c0_i32_0 : i32, i32
  }
  func.func @transform_4(%arg0: i32) -> i32 {
    %c0_i32 = arith.constant 0 : i32
    %c0_i32_0 = arith.constant 0 : i32
    return %c0_i32 : i32
  }
  func.func @transform_5(%arg0: i32) -> (i32, i32) {
    %c0_i32 = arith.constant 0 : i32
    %c0_i32_0 = arith.constant 0 : i32
    return %arg0, %c0_i32 : i32, i32
  }
}

</mosaic_0001>

<llo_original>
// kernel: tpu_custom_call.1
$region0: #{tpu_custom_call.1}
  #allocation0 [shape = 'u32[]', space=smem, size = 0x4, offset = 0x4, fixed_abs, tag = 'smem constant byte address 0x4 - core index']
  #allocation1 [shape = 'u32[144,128]{1,0:T(1,128)}', space=vmem, size = 0x12000, scoped, tag = 'internal scratch']
  #allocation2 [shape = 'f32[1]{0:T(128)S(6)}', space=smem, size = 0x200, scoped, tag = 'scoped memory for tpu_custom_call.1']
  %s0 = inlined_call_operand.vmem [shape: f32[1024,32], index: 0, kind: input, shape index: {}]
  %s1 = inlined_call_operand.vmem [shape: f32[32,64], index: 1, kind: input, shape index: {}]
  %s2 = inlined_call_operand.vmem [shape: f32[1,64], index: 2, kind: input, shape index: {}]
  %s3 = inlined_call_operand.vmem [shape: f32[1,64], index: 3, kind: input, shape index: {}]
  %s4 = inlined_call_operand.<no memory space> [shape: f32[1], index: 4, kind: input, shape index: {}]
  %s5 = inlined_call_operand.vmem [shape: f32[1024,1], index: 5, kind: output, shape index: {}]
  %s6 = sld [smem:[#allocation0]]
  $region30: #{tpu_custom_call.1} parent=0
    _
  %s8 = ssub.s32 1, %s6
  %s9 = scalar_select 0, %s8, %s6
  %10 = sst [smem:[#allocation2]] %s4
  // Predicated region
  $region2: #{tpu_custom_call.1} parent=0 // pred_check
    _
  $region3: #{tpu_custom_call.1} parent=0 // pred_check_branch
    %12 = sbr.rel (0) target = $region5
  $region4: #{tpu_custom_call.1} parent=0 // pred_region
    _
  $region5: #{tpu_custom_call.1} parent=0 // pred_fallthru
    _
  // Predicated region
  $region6: #{tpu_custom_call.1} parent=0 // pred_check
    _
  $region7: #{tpu_custom_call.1} parent=0 // pred_check_branch
    %14 = sbr.rel (0) target = $region9
  $region8: #{tpu_custom_call.1} parent=0 // pred_region
    _
  $region9: #{tpu_custom_call.1} parent=0 // pred_fallthru
    _
  // Predicated region
  $region10: #{tpu_custom_call.1} parent=0 // pred_check
    _
  $region11: #{tpu_custom_call.1} parent=0 // pred_check_branch
    %16 = sbr.rel (0) target = $region13
  $region12: #{tpu_custom_call.1} parent=0 // pred_region
    _
  $region13: #{tpu_custom_call.1} parent=0 // pred_fallthru
    _
  // Predicated region
  $region14: #{tpu_custom_call.1} parent=0 // pred_check
    _
  $region15: #{tpu_custom_call.1} parent=0 // pred_check_branch
    %18 = sbr.rel (0) target = $region17
  $region16: #{tpu_custom_call.1} parent=0 // pred_region
    _
  $region17: #{tpu_custom_call.1} parent=0 // pred_fallthru
    _
  // Predicated region
  $region18: #{tpu_custom_call.1} parent=0 // pred_check
    _
  $region19: #{tpu_custom_call.1} parent=0 // pred_check_branch
    %20 = sbr.rel (0) target = $region21
  $region20: #{tpu_custom_call.1} parent=0 // pred_region
    _
  $region21: #{tpu_custom_call.1} parent=0 // pred_fallthru
    _
  %v21 = vld [vmem:[%s0] sm:$0xff]
  %v22 = vld [vmem:[%s0 + $0x8] sm:$0xff]
  %v23 = vld [vmem:[%s0 + $0x10] sm:$0xff]
  %v24 = vld [vmem:[%s0 + $0x18] sm:$0xff]
  %v25 = vld [vmem:[%s0 + $0x20] sm:$0xff]
  %v26 = vld [vmem:[%s0 + $0x28] sm:$0xff]
  %v27 = vld [vmem:[%s0 + $0x30] sm:$0xff]
  %v28 = vld [vmem:[%s0 + $0x38] sm:$0xff]
  %v29 = vld [vmem:[%s0 + $0x40] sm:$0xff]
  %v30 = vld [vmem:[%s0 + $0x48] sm:$0xff]
  %v31 = vld [vmem:[%s0 + $0x50] sm:$0xff]
  %v32 = vld [vmem:[%s0 + $0x58] sm:$0xff]
  %v33 = vld [vmem:[%s0 + $0x60] sm:$0xff]
  %v34 = vld [vmem:[%s0 + $0x68] sm:$0xff]
  %v35 = vld [vmem:[%s0 + $0x70] sm:$0xff]
  %v36 = vld [vmem:[%s0 + $0x78] sm:$0xff]
  %v37 = vld [vmem:[%s0 + $0x80] sm:$0xff]
  %v38 = vld [vmem:[%s0 + $0x88] sm:$0xff]
  %v39 = vld [vmem:[%s0 + $0x90] sm:$0xff]
  %v40 = vld [vmem:[%s0 + $0x98] sm:$0xff]
  %v41 = vld [vmem:[%s0 + $0xa0] sm:$0xff]
  %v42 = vld [vmem:[%s0 + $0xa8] sm:$0xff]
  %v43 = vld [vmem:[%s0 + $0xb0] sm:$0xff]
  %v44 = vld [vmem:[%s0 + $0xb8] sm:$0xff]
  %v45 = vld [vmem:[%s0 + $0xc0] sm:$0xff]
  %v46 = vld [vmem:[%s0 + $0xc8] sm:$0xff]
  %v47 = vld [vmem:[%s0 + $0xd0] sm:$0xff]
  %v48 = vld [vmem:[%s0 + $0xd8] sm:$0xff]
  %v49 = vld [vmem:[%s0 + $0xe0] sm:$0xff]
  %v50 = vld [vmem:[%s0 + $0xe8] sm:$0xff]
  %v51 = vld [vmem:[%s0 + $0xf0] sm:$0xff]
  %v52 = vld [vmem:[%s0 + $0xf8] sm:$0xff]
  %v53 = vld [vmem:[%s0 + $0x100] sm:$0xff]
  %v54 = vld [vmem:[%s0 + $0x108] sm:$0xff]
  %v55 = vld [vmem:[%s0 + $0x110] sm:$0xff]
  %v56 = vld [vmem:[%s0 + $0x118] sm:$0xff]
  %v57 = vld [vmem:[%s0 + $0x120] sm:$0xff]
  %v58 = vld [vmem:[%s0 + $0x128] sm:$0xff]
  %v59 = vld [vmem:[%s0 + $0x130] sm:$0xff]
  %v60 = vld [vmem:[%s0 + $0x138] sm:$0xff]
  %v61 = vld [vmem:[%s0 + $0x140] sm:$0xff]
  %v62 = vld [vmem:[%s0 + $0x148] sm:$0xff]
  %v63 = vld [vmem:[%s0 + $0x150] sm:$0xff]
  %v64 = vld [vmem:[%s0 + $0x158] sm:$0xff]
  %v65 = vld [vmem:[%s0 + $0x160] sm:$0xff]
  %v66 = vld [vmem:[%s0 + $0x168] sm:$0xff]
  %v67 = vld [vmem:[%s0 + $0x170] sm:$0xff]
  %v68 = vld [vmem:[%s0 + $0x178] sm:$0xff]
  %v69 = vld [vmem:[%s0 + $0x180] sm:$0xff]
  %v70 = vld [vmem:[%s0 + $0x188] sm:$0xff]
  %v71 = vld [vmem:[%s0 + $0x190] sm:$0xff]
  %v72 = vld [vmem:[%s0 + $0x198] sm:$0xff]
  %v73 = vld [vmem:[%s0 + $0x1a0] sm:$0xff]
  %v74 = vld [vmem:[%s0 + $0x1a8] sm:$0xff]
  %v75 = vld [vmem:[%s0 + $0x1b0] sm:$0xff]
  %v76 = vld [vmem:[%s0 + $0x1b8] sm:$0xff]
  %v77 = vld [vmem:[%s0 + $0x1c0] sm:$0xff]
  %v78 = vld [vmem:[%s0 + $0x1c8] sm:$0xff]
  %v79 = vld [vmem:[%s0 + $0x1d0] sm:$0xff]
  %v80 = vld [vmem:[%s0 + $0x1d8] sm:$0xff]
  %v81 = vld [vmem:[%s0 + $0x1e0] sm:$0xff]
  %v82 = vld [vmem:[%s0 + $0x1e8] sm:$0xff]
  %v83 = vld [vmem:[%s0 + $0x1f0] sm:$0xff]
  %v84 = vld [vmem:[%s0 + $0x1f8] sm:$0xff]
  %v85 = vld [vmem:[%s0 + $0x200] sm:$0xff]
  %v86 = vld [vmem:[%s0 + $0x208] sm:$0xff]
  %v87 = vld [vmem:[%s0 + $0x210] sm:$0xff]
  %v88 = vld [vmem:[%s0 + $0x218] sm:$0xff]
  %v89 = vld [vmem:[%s0 + $0x220] sm:$0xff]
  %v90 = vld [vmem:[%s0 + $0x228] sm:$0xff]
  %v91 = vld [vmem:[%s0 + $0x230] sm:$0xff]
  %v92 = vld [vmem:[%s0 + $0x238] sm:$0xff]
  %v93 = vld [vmem:[%s0 + $0x240] sm:$0xff]
  %v94 = vld [vmem:[%s0 + $0x248] sm:$0xff]
  %v95 = vld [vmem:[%s0 + $0x250] sm:$0xff]
  %v96 = vld [vmem:[%s0 + $0x258] sm:$0xff]
  %v97 = vld [vmem:[%s0 + $0x260] sm:$0xff]
  %v98 = vld [vmem:[%s0 + $0x268] sm:$0xff]
  %v99 = vld [vmem:[%s0 + $0x270] sm:$0xff]
  %v100 = vld [vmem:[%s0 + $0x278] sm:$0xff]
  %v101 = vld [vmem:[%s0 + $0x280] sm:$0xff]
  %v102 = vld [vmem:[%s0 + $0x288] sm:$0xff]
  %v103 = vld [vmem:[%s0 + $0x290] sm:$0xff]
  %v104 = vld [vmem:[%s0 + $0x298] sm:$0xff]
  %v105 = vld [vmem:[%s0 + $0x2a0] sm:$0xff]
  %v106 = vld [vmem:[%s0 + $0x2a8] sm:$0xff]
  %v107 = vld [vmem:[%s0 + $0x2b0] sm:$0xff]
  %v108 = vld [vmem:[%s0 + $0x2b8] sm:$0xff]
  %v109 = vld [vmem:[%s0 + $0x2c0] sm:$0xff]
  %v110 = vld [vmem:[%s0 + $0x2c8] sm:$0xff]
  %v111 = vld [vmem:[%s0 + $0x2d0] sm:$0xff]
  %v112 = vld [vmem:[%s0 + $0x2d8] sm:$0xff]
  %v113 = vld [vmem:[%s0 + $0x2e0] sm:$0xff]
  %v114 = vld [vmem:[%s0 + $0x2e8] sm:$0xff]
  %v115 = vld [vmem:[%s0 + $0x2f0] sm:$0xff]
  %v116 = vld [vmem:[%s0 + $0x2f8] sm:$0xff]
  %v117 = vld [vmem:[%s0 + $0x300] sm:$0xff]
  %v118 = vld [vmem:[%s0 + $0x308] sm:$0xff]
  %v119 = vld [vmem:[%s0 + $0x310] sm:$0xff]
  %v120 = vld [vmem:[%s0 + $0x318] sm:$0xff]
  %v121 = vld [vmem:[%s0 + $0x320] sm:$0xff]
  %v122 = vld [vmem:[%s0 + $0x328] sm:$0xff]
  %v123 = vld [vmem:[%s0 + $0x330] sm:$0xff]
  %v124 = vld [vmem:[%s0 + $0x338] sm:$0xff]
  %v125 = vld [vmem:[%s0 + $0x340] sm:$0xff]
  %v126 = vld [vmem:[%s0 + $0x348] sm:$0xff]
  %v127 = vld [vmem:[%s0 + $0x350] sm:$0xff]
  %v128 = vld [vmem:[%s0 + $0x358] sm:$0xff]
  %v129 = vld [vmem:[%s0 + $0x360] sm:$0xff]
  %v130 = vld [vmem:[%s0 + $0x368] sm:$0xff]
  %v131 = vld [vmem:[%s0 + $0x370] sm:$0xff]
  %v132 = vld [vmem:[%s0 + $0x378] sm:$0xff]
  %v133 = vld [vmem:[%s0 + $0x380] sm:$0xff]
  %v134 = vld [vmem:[%s0 + $0x388] sm:$0xff]
  %v135 = vld [vmem:[%s0 + $0x390] sm:$0xff]
  %v136 = vld [vmem:[%s0 + $0x398] sm:$0xff]
  %v137 = vld [vmem:[%s0 + $0x3a0] sm:$0xff]
  %v138 = vld [vmem:[%s0 + $0x3a8] sm:$0xff]
  %v139 = vld [vmem:[%s0 + $0x3b0] sm:$0xff]
  %v140 = vld [vmem:[%s0 + $0x3b8] sm:$0xff]
  %v141 = vld [vmem:[%s0 + $0x3c0] sm:$0xff]
  %v142 = vld [vmem:[%s0 + $0x3c8] sm:$0xff]
  %v143 = vld [vmem:[%s0 + $0x3d0] sm:$0xff]
  %v144 = vld [vmem:[%s0 + $0x3d8] sm:$0xff]
  %v145 = vld [vmem:[%s0 + $0x3e0] sm:$0xff]
  %v146 = vld [vmem:[%s0 + $0x3e8] sm:$0xff]
  %v147 = vld [vmem:[%s0 + $0x3f0] sm:$0xff]
  %v148 = vld [vmem:[%s0 + $0x3f8] sm:$0xff]
  %v149 = vld [vmem:[%s1] sm:$0xff]
  %v150 = vld [vmem:[%s1 + $0x8] sm:$0xff]
  %v151 = vld [vmem:[%s1 + $0x10] sm:$0xff]
  %v152 = vld [vmem:[%s1 + $0x18] sm:$0xff]
  %v153 = vld [vmem:[%s2] sm:$0x1]
  %v155 = vlaneseq
  %v156 = vshrl.u32 %v155, 7
  %v157 = vsub.s32 0, %v156
  %v158 = vrot.slane %v153, %v157
  %vm160 = vcmask 261120
  %v162 = vsel %vm160, %v21, 0
  %v165 = vsel %vm160, %v22, 0
  %v168 = vsel %vm160, %v23, 0
  %v171 = vsel %vm160, %v24, 0
  %v174 = vsel %vm160, %v25, 0
  %v177 = vsel %vm160, %v26, 0
  %v180 = vsel %vm160, %v27, 0
  %v183 = vsel %vm160, %v28, 0
  %v186 = vsel %vm160, %v29, 0
  %v189 = vsel %vm160, %v30, 0
  %v192 = vsel %vm160, %v31, 0
  %v195 = vsel %vm160, %v32, 0
  %v198 = vsel %vm160, %v33, 0
  %v201 = vsel %vm160, %v34, 0
  %v204 = vsel %vm160, %v35, 0
  %v207 = vsel %vm160, %v36, 0
  %v210 = vsel %vm160, %v37, 0
  %v213 = vsel %vm160, %v38, 0
  %v216 = vsel %vm160, %v39, 0
  %v219 = vsel %vm160, %v40, 0
  %v222 = vsel %vm160, %v41, 0
  %v225 = vsel %vm160, %v42, 0
  %v228 = vsel %vm160, %v43, 0
  %v231 = vsel %vm160, %v44, 0
  %v234 = vsel %vm160, %v45, 0
  %v237 = vsel %vm160, %v46, 0
  %v240 = vsel %vm160, %v47, 0
  %v243 = vsel %vm160, %v48, 0
  %v246 = vsel %vm160, %v49, 0
  %v249 = vsel %vm160, %v50, 0
  %v252 = vsel %vm160, %v51, 0
  %v255 = vsel %vm160, %v52, 0
  %v258 = vsel %vm160, %v53, 0
  %v261 = vsel %vm160, %v54, 0
  %v264 = vsel %vm160, %v55, 0
  %v267 = vsel %vm160, %v56, 0
  %v270 = vsel %vm160, %v57, 0
  %v273 = vsel %vm160, %v58, 0
  %v276 = vsel %vm160, %v59, 0
  %v279 = vsel %vm160, %v60, 0
  %v282 = vsel %vm160, %v61, 0
  %v285 = vsel %vm160, %v62, 0
  %v288 = vsel %vm160, %v63, 0
  %v291 = vsel %vm160, %v64, 0
  %v294 = vsel %vm160, %v65, 0
  %v297 = vsel %vm160, %v66, 0
  %v300 = vsel %vm160, %v67, 0
  %v303 = vsel %vm160, %v68, 0
  %v306 = vsel %vm160, %v69, 0
  %v309 = vsel %vm160, %v70, 0
  %v312 = vsel %vm160, %v71, 0
  %v315 = vsel %vm160, %v72, 0
  %v318 = vsel %vm160, %v73, 0
  %v321 = vsel %vm160, %v74, 0
  %v324 = vsel %vm160, %v75, 0
  %v327 = vsel %vm160, %v76, 0
  %v330 = vsel %vm160, %v77, 0
  %v333 = vsel %vm160, %v78, 0
  %v336 = vsel %vm160, %v79, 0
  %v339 = vsel %vm160, %v80, 0
  %v342 = vsel %vm160, %v81, 0
  %v345 = vsel %vm160, %v82, 0
  %v348 = vsel %vm160, %v83, 0
  %v351 = vsel %vm160, %v84, 0
  %v354 = vsel %vm160, %v85, 0
  %v357 = vsel %vm160, %v86, 0
  %v360 = vsel %vm160, %v87, 0
  %v363 = vsel %vm160, %v88, 0
  %v366 = vsel %vm160, %v89, 0
  %v369 = vsel %vm160, %v90, 0
  %v372 = vsel %vm160, %v91, 0
  %v375 = vsel %vm160, %v92, 0
  %v378 = vsel %vm160, %v93, 0
  %v381 = vsel %vm160, %v94, 0
  %v384 = vsel %vm160, %v95, 0
  %v387 = vsel %vm160, %v96, 0
  %v390 = vsel %vm160, %v97, 0
  %v393 = vsel %vm160, %v98, 0
  %v396 = vsel %vm160, %v99, 0
  %v399 = vsel %vm160, %v100, 0
  %v402 = vsel %vm160, %v101, 0
  %v405 = vsel %vm160, %v102, 0
  %v408 = vsel %vm160, %v103, 0
  %v411 = vsel %vm160, %v104, 0
  %v414 = vsel %vm160, %v105, 0
  %v417 = vsel %vm160, %v106, 0
  %v420 = vsel %vm160, %v107, 0
  %v423 = vsel %vm160, %v108, 0
  %v426 = vsel %vm160, %v109, 0
  %v429 = vsel %vm160, %v110, 0
  %v432 = vsel %vm160, %v111, 0
  %v435 = vsel %vm160, %v112, 0
  %v438 = vsel %vm160, %v113, 0
  %v441 = vsel %vm160, %v114, 0
  %v444 = vsel %vm160, %v115, 0
  %v447 = vsel %vm160, %v116, 0
  %v450 = vsel %vm160, %v117, 0
  %v453 = vsel %vm160, %v118, 0
  %v456 = vsel %vm160, %v119, 0
  %v459 = vsel %vm160, %v120, 0
  %v462 = vsel %vm160, %v121, 0
  %v465 = vsel %vm160, %v122, 0
  %v468 = vsel %vm160, %v123, 0
  %v471 = vsel %vm160, %v124, 0
  %v474 = vsel %vm160, %v125, 0
  %v477 = vsel %vm160, %v126, 0
  %v480 = vsel %vm160, %v127, 0
  %v483 = vsel %vm160, %v128, 0
  %v486 = vsel %vm160, %v129, 0
  %v489 = vsel %vm160, %v130, 0
  %v492 = vsel %vm160, %v131, 0
  %v495 = vsel %vm160, %v132, 0
  %v498 = vsel %vm160, %v133, 0
  %v501 = vsel %vm160, %v134, 0
  %v504 = vsel %vm160, %v135, 0
  %v507 = vsel %vm160, %v136, 0
  %v510 = vsel %vm160, %v137, 0
  %v513 = vsel %vm160, %v138, 0
  %v516 = vsel %vm160, %v139, 0
  %v519 = vsel %vm160, %v140, 0
  %v522 = vsel %vm160, %v141, 0
  %v525 = vsel %vm160, %v142, 0
  %v528 = vsel %vm160, %v143, 0
  %v531 = vsel %vm160, %v144, 0
  %v534 = vsel %vm160, %v145, 0
  %v537 = vsel %vm160, %v146, 0
  %v540 = vsel %vm160, %v147, 0
  %v543 = vsel %vm160, %v148, 0
  %545 = vmatprep.subr.mxu0 0.0
  %546 = vmatpush1.msra.mxu0 %v149
  %547 = vmatprep.subr.mxu0 0.0
  %548 = vmatpush1.msra.mxu0 %v150
  %549 = vmatprep.subr.mxu0 0.0
  %550 = vmatpush1.msra.mxu0 %v151
  %551 = vmatprep.subr.mxu0 0.0
  %552 = vmatpush1.msra.mxu0 %v152
  %553 = vmatprep.subr.mxu0 0.0
  %554 = vmatpush1.msra.mxu0 0.0
  %555 = vmatprep.subr.mxu0 0.0
  %556 = vmatpush1.msra.mxu0 0.0
  %557 = vmatprep.subr.mxu0 0.0
  %558 = vmatpush1.msra.mxu0 0.0
  %559 = vmatprep.subr.mxu0 0.0
  %560 = vmatpush1.msra.mxu0 0.0
  %561 = vmatprep.subr.mxu0 0.0
  %562 = vmatpush1.msra.mxu0 0.0
  %563 = vmatprep.subr.mxu0 0.0
  %564 = vmatpush1.msra.mxu0 0.0
  %565 = vmatprep.subr.mxu0 0.0
  %566 = vmatpush1.msra.mxu0 0.0
  %567 = vmatprep.subr.mxu0 0.0
  %568 = vmatpush1.msra.mxu0 0.0
  %569 = vmatprep.subr.mxu0 0.0
  %570 = vmatpush1.msra.mxu0 0.0
  %571 = vmatprep.subr.mxu0 0.0
  %572 = vmatpush1.msra.mxu0 0.0
  %573 = vmatprep.subr.mxu0 0.0
  %574 = vmatpush1.msra.mxu0 0.0
  %575 = vmatprep.subr.mxu0 0.0
  %576 = vmatpush1.msra.mxu0 0.0
  %577 = vmatprep.subr.mxu0 0.0
  %578 = vmatpush1.msra.mxu0 0.0
  %579 = vmatprep.subr.mxu0 0.0
  %580 = vmatpush1.msra.mxu0 0.0
  %581 = vmatprep.subr.mxu0 0.0
  %582 = vmatpush1.msra.mxu0 0.0
  %583 = vmatprep.subr.mxu0 0.0
  %584 = vmatpush1.msra.mxu0 0.0
  %585 = vmatprep.subr.mxu0 0.0
  %586 = vmatpush1.msra.mxu0 0.0
  %587 = vmatprep.subr.mxu0 0.0
  %588 = vmatpush1.msra.mxu0 0.0
  %589 = vmatprep.subr.mxu0 0.0
  %590 = vmatpush1.msra.mxu0 0.0
  %591 = vmatprep.subr.mxu0 0.0
  %592 = vmatpush1.msra.mxu0 0.0
  %593 = vmatprep.subr.mxu0 0.0
  %594 = vmatpush1.msra.mxu0 0.0
  %595 = vmatprep.subr.mxu0 0.0
  %596 = vmatpush1.msra.mxu0 0.0
  %597 = vmatprep.subr.mxu0 0.0
  %598 = vmatpush1.msra.mxu0 0.0
  %599 = vmatprep.subr.mxu0 0.0
  %600 = vmatpush1.msra.mxu0 0.0
  %601 = vmatprep.subr.mxu0 0.0
  %602 = vmatpush1.msra.mxu0 0.0
  %603 = vmatprep.subr.mxu0 0.0
  %604 = vmatpush1.msra.mxu0 0.0
  %605 = vmatprep.subr.mxu0 0.0
  %606 = vmatpush1.msra.mxu0 0.0
  %607 = vmatprep.subr.mxu0 0.0
  %608 = vmatpush1.msra.mxu0 0.0
  %609 = vmatprep.mubr.f32.mxu0 0.0
  %610 = vmatmul.mubr.f32.gmra.mrb[0].mxu0 %v162
  %v611 = vpop.f32.mrb[0].mxu0
  %v612 = vadd.f32 %v158, %v611
  %v613 = vpop.f32.mrb[0].mxu0
  %614 = vmatprep.mubr.f32.mxu0 0.0
  %615 = vmatmul.mubr.f32.gmra.mrb[0].mxu0 %v165
  %v616 = vpop.f32.mrb[0].mxu0
  %v617 = vadd.f32 %v158, %v616
  %v618 = vpop.f32.mrb[0].mxu0
  %619 = vmatprep.mubr.f32.mxu0 0.0
  %620 = vmatmul.mubr.f32.gmra.mrb[0].mxu0 %v168
  %v621 = vpop.f32.mrb[0].mxu0
  %v622 = vadd.f32 %v158, %v621
  %v623 = vpop.f32.mrb[0].mxu0
  %624 = vmatprep.mubr.f32.mxu0 0.0
  %625 = vmatmul.mubr.f32.gmra.mrb[0].mxu0 %v171
  %v626 = vpop.f32.mrb[0].mxu0
  %v627 = vadd.f32 %v158, %v626
  %v628 = vpop.f32.mrb[0].mxu0
  %629 = vmatprep.mubr.f32.mxu0 0.0
  %630 = vmatmul.mubr.f32.gmra.mrb[0].mxu0 %v174
  %v631 = vpop.f32.mrb[0].mxu0
  %v632 = vadd.f32 %v158, %v631
  %v633 = vpop.f32.mrb[0].mxu0
  %634 = vmatprep.mubr.f32.mxu0 0.0
  %635 = vmatmul.mubr.f32.gmra.mrb[0].mxu0 %v177
  %v636 = vpop.f32.mrb[0].mxu0
  %v637 = vadd.f32 %v158, %v636
  %v638 = vpop.f32.mrb[0].mxu0
  %639 = vmatprep.mubr.f32.mxu0 0.0
  %640 = vmatmul.mubr.f32.gmra.mrb[0].mxu0 %v180
  %v641 = vpop.f32.mrb[0].mxu0
  %v642 = vadd.f32 %v158, %v641
  %v643 = vpop.f32.mrb[0].mxu0
  %644 = vmatprep.mubr.f32.mxu0 0.0
  %645 = vmatmul.mubr.f32.gmra.mrb[0].mxu0 %v183
  %v646 = vpop.f32.mrb[0].mxu0
  %v647 = vadd.f32 %v158, %v646
  %v648 = vpop.f32.mrb[0].mxu0
  %649 = vmatprep.mubr.f32.mxu0 0.0
  %650 = vmatmul.mubr.f32.gmra.mrb[0].mxu0 %v186
  %v651 = vpop.f32.mrb[0].mxu0
  %v652 = vadd.f32 %v158, %v651
  %v653 = vpop.f32.mrb[0].mxu0
  %654 = vmatprep.mubr.f32.mxu0 0.0
  %655 = vmatmul.mubr.f32.gmra.mrb[0].mxu0 %v189
  %v656 = vpop.f32.mrb[0].mxu0
  %v657 = vadd.f32 %v158, %v656
  %v658 = vpop.f32.mrb[0].mxu0
  %659 = vmatprep.mubr.f32.mxu0 0.0
  %660 = vmatmul.mubr.f32.gmra.mrb[0].mxu0 %v192
  %v661 = vpop.f32.mrb[0].mxu0
  %v662 = vadd.f32 %v158, %v661
  %v663 = vpop.f32.mrb[0].mxu0
  %664 = vmatprep.mubr.f32.mxu0 0.0
  %665 = vmatmul.mubr.f32.gmra.mrb[0].mxu0 %v195
  %v666 = vpop.f32.mrb[0].mxu0
  %v667 = vadd.f32 %v158, %v666
  %v668 = vpop.f32.mrb[0].mxu0
  %669 = vmatprep.mubr.f32.mxu0 0.0
  %670 = vmatmul.mubr.f32.gmra.mrb[0].mxu0 %v198
  %v671 = vpop.f32.mrb[0].mxu0
  %v672 = vadd.f32 %v158, %v671
  %v673 = vpop.f32.mrb[0].mxu0
  %674 = vmatprep.mubr.f32.mxu0 0.0
  %675 = vmatmul.mubr.f32.gmra.mrb[0].mxu0 %v201
  %v676 = vpop.f32.mrb[0].mxu0
  %v677 = vadd.f32 %v158, %v676
  %v678 = vpop.f32.mrb[0].mxu0
  %679 = vmatprep.mubr.f32.mxu0 0.0
  %680 = vmatmul.mubr.f32.gmra.mrb[0].mxu0 %v204
  %v681 = vpop.f32.mrb[0].mxu0
  %v682 = vadd.f32 %v158, %v681
  %v683 = vpop.f32.mrb[0].mxu0
  %684 = vmatprep.mubr.f32.mxu0 0.0
  %685 = vmatmul.mubr.f32.gmra.mrb[0].mxu0 %v207
  %v686 = vpop.f32.mrb[0].mxu0
  %v687 = vadd.f32 %v158, %v686
  %v688 = vpop.f32.mrb[0].mxu0
  %689 = vmatprep.mubr.f32.mxu0 0.0
  %690 = vmatmul.mubr.f32.gmra.mrb[0].mxu0 %v210
  %v691 = vpop.f32.mrb[0].mxu0
  %v692 = vadd.f32 %v158, %v691
  %v693 = vpop.f32.mrb[0].mxu0
  %694 = vmatprep.mubr.f32.mxu0 0.0
  %695 = vmatmul.mubr.f32.gmra.mrb[0].mxu0 %v213
  %v696 = vpop.f32.mrb[0].mxu0
  %v697 = vadd.f32 %v158, %v696
  %v698 = vpop.f32.mrb[0].mxu0
  %699 = vmatprep.mubr.f32.mxu0 0.0
  %700 = vmatmul.mubr.f32.gmra.mrb[0].mxu0 %v216
  %v701 = vpop.f32.mrb[0].mxu0
  %v702 = vadd.f32 %v158, %v701
  %v703 = vpop.f32.mrb[0].mxu0
  %704 = vmatprep.mubr.f32.mxu0 0.0
  %705 = vmatmul.mubr.f32.gmra.mrb[0].mxu0 %v219
  %v706 = vpop.f32.mrb[0].mxu0
  %v707 = vadd.f32 %v158, %v706
  %v708 = vpop.f32.mrb[0].mxu0
  %709 = vmatprep.mubr.f32.mxu0 0.0
  %710 = vmatmul.mubr.f32.gmra.mrb[0].mxu0 %v222
  %v711 = vpop.f32.mrb[0].mxu0
  %v712 = vadd.f32 %v158, %v711
  %v713 = vpop.f32.mrb[0].mxu0
  %714 = vmatprep.mubr.f32.mxu0 0.0
  %715 = vmatmul.mubr.f32.gmra.mrb[0].mxu0 %v225
  %v716 = vpop.f32.mrb[0].mxu0
  %v717 = vadd.f32 %v158, %v716
  %v718 = vpop.f32.mrb[0].mxu0
  %719 = vmatprep.mubr.f32.mxu0 0.0
  %720 = vmatmul.mubr.f32.gmra.mrb[0].mxu0 %v228
  %v721 = vpop.f32.mrb[0].mxu0
  %v722 = vadd.f32 %v158, %v721
  %v723 = vpop.f32.mrb[0].mxu0
  %724 = vmatprep.mubr.f32.mxu0 0.0
  %725 = vmatmul.mubr.f32.gmra.mrb[0].mxu0 %v231
  %v726 = vpop.f32.mrb[0].mxu0
  %v727 = vadd.f32 %v158, %v726
  %v728 = vpop.f32.mrb[0].mxu0
  %729 = vmatprep.mubr.f32.mxu0 0.0
  %730 = vmatmul.mubr.f32.gmra.mrb[0].mxu0 %v234
  %v731 = vpop.f32.mrb[0].mxu0
  %v732 = vadd.f32 %v158, %v731
  %v733 = vpop.f32.mrb[0].mxu0
  %734 = vmatprep.mubr.f32.mxu0 0.0
  %735 = vmatmul.mubr.f32.gmra.mrb[0].mxu0 %v237
  %v736 = vpop.f32.mrb[0].mxu0
  %v737 = vadd.f32 %v158, %v736
  %v738 = vpop.f32.mrb[0].mxu0
  %739 = vmatprep.mubr.f32.mxu0 0.0
  %740 = vmatmul.mubr.f32.gmra.mrb[0].mxu0 %v240
  %v741 = vpop.f32.mrb[0].mxu0
  %v742 = vadd.f32 %v158, %v741
  %v743 = vpop.f32.mrb[0].mxu0
  %744 = vmatprep.mubr.f32.mxu0 0.0
  %745 = vmatmul.mubr.f32.gmra.mrb[0].mxu0 %v243
  %v746 = vpop.f32.mrb[0].mxu0
  %v747 = vadd.f32 %v158, %v746
  %v748 = vpop.f32.mrb[0].mxu0
  %749 = vmatprep.mubr.f32.mxu0 0.0
  %750 = vmatmul.mubr.f32.gmra.mrb[0].mxu0 %v246
  %v751 = vpop.f32.mrb[0].mxu0
  %v752 = vadd.f32 %v158, %v751
  %v753 = vpop.f32.mrb[0].mxu0
  %754 = vmatprep.mubr.f32.mxu0 0.0
  %755 = vmatmul.mubr.f32.gmra.mrb[0].mxu0 %v249
  %v756 = vpop.f32.mrb[0].mxu0
  %v757 = vadd.f32 %v158, %v756
  %v758 = vpop.f32.mrb[0].mxu0
  %759 = vmatprep.mubr.f32.mxu0 0.0
  %760 = vmatmul.mubr.f32.gmra.mrb[0].mxu0 %v252
  %v761 = vpop.f32.mrb[0].mxu0
  %v762 = vadd.f32 %v158, %v761
  %v763 = vpop.f32.mrb[0].mxu0
  %764 = vmatprep.mubr.f32.mxu0 0.0
  %765 = vmatmul.mubr.f32.gmra.mrb[0].mxu0 %v255
  %v766 = vpop.f32.mrb[0].mxu0
  %v767 = vadd.f32 %v158, %v766
  %v768 = vpop.f32.mrb[0].mxu0
  %769 = vmatprep.mubr.f32.mxu0 0.0
  %770 = vmatmul.mubr.f32.gmra.mrb[0].mxu0 %v258
  %v771 = vpop.f32.mrb[0].mxu0
  %v772 = vadd.f32 %v158, %v771
  %v773 = vpop.f32.mrb[0].mxu0
  %774 = vmatprep.mubr.f32.mxu0 0.0
  %775 = vmatmul.mubr.f32.gmra.mrb[0].mxu0 %v261
  %v776 = vpop.f32.mrb[0].mxu0
  %v777 = vadd.f32 %v158, %v776
  %v778 = vpop.f32.mrb[0].mxu0
  %779 = vmatprep.mubr.f32.mxu0 0.0
  %780 = vmatmul.mubr.f32.gmra.mrb[0].mxu0 %v264
  %v781 = vpop.f32.mrb[0].mxu0
  %v782 = vadd.f32 %v158, %v781
  %v783 = vpop.f32.mrb[0].mxu0
  %784 = vmatprep.mubr.f32.mxu0 0.0
  %785 = vmatmul.mubr.f32.gmra.mrb[0].mxu0 %v267
  %v786 = vpop.f32.mrb[0].mxu0
  %v787 = vadd.f32 %v158, %v786
  %v788 = vpop.f32.mrb[0].mxu0
  %789 = vmatprep.mubr.f32.mxu0 0.0
  %790 = vmatmul.mubr.f32.gmra.mrb[0].mxu0 %v270
  %v791 = vpop.f32.mrb[0].mxu0
  %v792 = vadd.f32 %v158, %v791
  %v793 = vpop.f32.mrb[0].mxu0
  %794 = vmatprep.mubr.f32.mxu0 0.0
  %795 = vmatmul.mubr.f32.gmra.mrb[0].mxu0 %v273
  %v796 = vpop.f32.mrb[0].mxu0
  %v797 = vadd.f32 %v158, %v796
  %v798 = vpop.f32.mrb[0].mxu0
  %799 = vmatprep.mubr.f32.mxu0 0.0
  %800 = vmatmul.mubr.f32.gmra.mrb[0].mxu0 %v276
  %v801 = vpop.f32.mrb[0].mxu0
  %v802 = vadd.f32 %v158, %v801
  %v803 = vpop.f32.mrb[0].mxu0
  %804 = vmatprep.mubr.f32.mxu0 0.0
  %805 = vmatmul.mubr.f32.gmra.mrb[0].mxu0 %v279
  %v806 = vpop.f32.mrb[0].mxu0
  %v807 = vadd.f32 %v158, %v806
  %v808 = vpop.f32.mrb[0].mxu0
  %809 = vmatprep.mubr.f32.mxu0 0.0
  %810 = vmatmul.mubr.f32.gmra.mrb[0].mxu0 %v282
  %v811 = vpop.f32.mrb[0].mxu0
  %v812 = vadd.f32 %v158, %v811
  %v813 = vpop.f32.mrb[0].mxu0
  %814 = vmatprep.mubr.f32.mxu0 0.0
  %815 = vmatmul.mubr.f32.gmra.mrb[0].mxu0 %v285
  %v816 = vpop.f32.mrb[0].mxu0
  %v817 = vadd.f32 %v158, %v816
  %v818 = vpop.f32.mrb[0].mxu0
  %819 = vmatprep.mubr.f32.mxu0 0.0
  %820 = vmatmul.mubr.f32.gmra.mrb[0].mxu0 %v288
  %v821 = vpop.f32.mrb[0].mxu0
  %v822 = vadd.f32 %v158, %v821
  %v823 = vpop.f32.mrb[0].mxu0
  %824 = vmatprep.mubr.f32.mxu0 0.0
  %825 = vmatmul.mubr.f32.gmra.mrb[0].mxu0 %v291
  %v826 = vpop.f32.mrb[0].mxu0
  %v827 = vadd.f32 %v158, %v826
  %v828 = vpop.f32.mrb[0].mxu0
  %829 = vmatprep.mubr.f32.mxu0 0.0
  %830 = vmatmul.mubr.f32.gmra.mrb[0].mxu0 %v294
  %v831 = vpop.f32.mrb[0].mxu0
  %v832 = vadd.f32 %v158, %v831
  %v833 = vpop.f32.mrb[0].mxu0
  %834 = vmatprep.mubr.f32.mxu0 0.0
  %835 = vmatmul.mubr.f32.gmra.mrb[0].mxu0 %v297
  %v836 = vpop.f32.mrb[0].mxu0
  %v837 = vadd.f32 %v158, %v836
  %v838 = vpop.f32.mrb[0].mxu0
  %839 = vmatprep.mubr.f32.mxu0 0.0
  %840 = vmatmul.mubr.f32.gmra.mrb[0].mxu0 %v300
  %v841 = vpop.f32.mrb[0].mxu0
  %v842 = vadd.f32 %v158, %v841
  %v843 = vpop.f32.mrb[0].mxu0
  %844 = vmatprep.mubr.f32.mxu0 0.0
  %845 = vmatmul.mubr.f32.gmra.mrb[0].mxu0 %v303
  %v846 = vpop.f32.mrb[0].mxu0
  %v847 = vadd.f32 %v158, %v846
  %v848 = vpop.f32.mrb[0].mxu0
  %849 = vmatprep.mubr.f32.mxu0 0.0
  %850 = vmatmul.mubr.f32.gmra.mrb[0].mxu0 %v306
  %v851 = vpop.f32.mrb[0].mxu0
  %v852 = vadd.f32 %v158, %v851
  %v853 = vpop.f32.mrb[0].mxu0
  %854 = vmatprep.mubr.f32.mxu0 0.0
  %855 = vmatmul.mubr.f32.gmra.mrb[0].mxu0 %v309
  %v856 = vpop.f32.mrb[0].mxu0
  %v857 = vadd.f32 %v158, %v856
  %v858 = vpop.f32.mrb[0].mxu0
  %859 = vmatprep.mubr.f32.mxu0 0.0
  %860 = vmatmul.mubr.f32.gmra.mrb[0].mxu0 %v312
  %v861 = vpop.f32.mrb[0].mxu0
  %v862 = vadd.f32 %v158, %v861
  %v863 = vpop.f32.mrb[0].mxu0
  %864 = vmatprep.mubr.f32.mxu0 0.0
  %865 = vmatmul.mubr.f32.gmra.mrb[0].mxu0 %v315
  %v866 = vpop.f32.mrb[0].mxu0
  %v867 = vadd.f32 %v158, %v866
  %v868 = vpop.f32.mrb[0].mxu0
  %869 = vmatprep.mubr.f32.mxu0 0.0
  %870 = vmatmul.mubr.f32.gmra.mrb[0].mxu0 %v318
  %v871 = vpop.f32.mrb[0].mxu0
  %v872 = vadd.f32 %v158, %v871
  %v873 = vpop.f32.mrb[0].mxu0
  %874 = vmatprep.mubr.f32.mxu0 0.0
  %875 = vmatmul.mubr.f32.gmra.mrb[0].mxu0 %v321
  %v876 = vpop.f32.mrb[0].mxu0
  %v877 = vadd.f32 %v158, %v876
  %v878 = vpop.f32.mrb[0].mxu0
  %879 = vmatprep.mubr.f32.mxu0 0.0
  %880 = vmatmul.mubr.f32.gmra.mrb[0].mxu0 %v324
  %v881 = vpop.f32.mrb[0].mxu0
  %v882 = vadd.f32 %v158, %v881
  %v883 = vpop.f32.mrb[0].mxu0
  %884 = vmatprep.mubr.f32.mxu0 0.0
  %885 = vmatmul.mubr.f32.gmra.mrb[0].mxu0 %v327
  %v886 = vpop.f32.mrb[0].mxu0
  %v887 = vadd.f32 %v158, %v886
  %v888 = vpop.f32.mrb[0].mxu0
  %889 = vmatprep.mubr.f32.mxu0 0.0
  %890 = vmatmul.mubr.f32.gmra.mrb[0].mxu0 %v330
  %v891 = vpop.f32.mrb[0].mxu0
  %v892 = vadd.f32 %v158, %v891
  %v893 = vpop.f32.mrb[0].mxu0
  %894 = vmatprep.mubr.f32.mxu0 0.0
  %895 = vmatmul.mubr.f32.gmra.mrb[0].mxu0 %v333
  %v896 = vpop.f32.mrb[0].mxu0
  %v897 = vadd.f32 %v158, %v896
  %v898 = vpop.f32.mrb[0].mxu0
  %899 = vmatprep.mubr.f32.mxu0 0.0
  %900 = vmatmul.mubr.f32.gmra.mrb[0].mxu0 %v336
  %v901 = vpop.f32.mrb[0].mxu0
  %v902 = vadd.f32 %v158, %v901
  %v903 = vpop.f32.mrb[0].mxu0
  %904 = vmatprep.mubr.f32.mxu0 0.0
  %905 = vmatmul.mubr.f32.gmra.mrb[0].mxu0 %v339
  %v906 = vpop.f32.mrb[0].mxu0
  %v907 = vadd.f32 %v158, %v906
  %v908 = vpop.f32.mrb[0].mxu0
  %909 = vmatprep.mubr.f32.mxu0 0.0
  %910 = vmatmul.mubr.f32.gmra.mrb[0].mxu0 %v342
  %v911 = vpop.f32.mrb[0].mxu0
  %v912 = vadd.f32 %v158, %v911
  %v913 = vpop.f32.mrb[0].mxu0
  %914 = vmatprep.mubr.f32.mxu0 0.0
  %915 = vmatmul.mubr.f32.gmra.mrb[0].mxu0 %v345
  %v916 = vpop.f32.mrb[0].mxu0
  %v917 = vadd.f32 %v158, %v916
  %v918 = vpop.f32.mrb[0].mxu0
  %919 = vmatprep.mubr.f32.mxu0 0.0
  %920 = vmatmul.mubr.f32.gmra.mrb[0].mxu0 %v348
  %v921 = vpop.f32.mrb[0].mxu0
  %v922 = vadd.f32 %v158, %v921
  %v923 = vpop.f32.mrb[0].mxu0
  %924 = vmatprep.mubr.f32.mxu0 0.0
  %925 = vmatmul.mubr.f32.gmra.mrb[0].mxu0 %v351
  %v926 = vpop.f32.mrb[0].mxu0
  %v927 = vadd.f32 %v158, %v926
  %v928 = vpop.f32.mrb[0].mxu0
  %929 = vmatprep.mubr.f32.mxu0 0.0
  %930 = vmatmul.mubr.f32.gmra.mrb[0].mxu0 %v354
  %v931 = vpop.f32.mrb[0].mxu0
  %v932 = vadd.f32 %v158, %v931
  %v933 = vpop.f32.mrb[0].mxu0
  %934 = vmatprep.mubr.f32.mxu0 0.0
  %935 = vmatmul.mubr.f32.gmra.mrb[0].mxu0 %v357
  %v936 = vpop.f32.mrb[0].mxu0
  %v937 = vadd.f32 %v158, %v936
  %v938 = vpop.f32.mrb[0].mxu0
  %939 = vmatprep.mubr.f32.mxu0 0.0
  %940 = vmatmul.mubr.f32.gmra.mrb[0].mxu0 %v360
  %v941 = vpop.f32.mrb[0].mxu0
  %v942 = vadd.f32 %v158, %v941
  %v943 = vpop.f32.mrb[0].mxu0
  %944 = vmatprep.mubr.f32.mxu0 0.0
  %945 = vmatmul.mubr.f32.gmra.mrb[0].mxu0 %v363
  %v946 = vpop.f32.mrb[0].mxu0
  %v947 = vadd.f32 %v158, %v946
  %v948 = vpop.f32.mrb[0].mxu0
  %949 = vmatprep.mubr.f32.mxu0 0.0
  %950 = vmatmul.mubr.f32.gmra.mrb[0].mxu0 %v366
  %v951 = vpop.f32.mrb[0].mxu0
  %v952 = vadd.f32 %v158, %v951
  %v953 = vpop.f32.mrb[0].mxu0
  %954 = vmatprep.mubr.f32.mxu0 0.0
  %955 = vmatmul.mubr.f32.gmra.mrb[0].mxu0 %v369
  %v956 = vpop.f32.mrb[0].mxu0
  %v957 = vadd.f32 %v158, %v956
  %v958 = vpop.f32.mrb[0].mxu0
  %959 = vmatprep.mubr.f32.mxu0 0.0
  %960 = vmatmul.mubr.f32.gmra.mrb[0].mxu0 %v372
  %v961 = vpop.f32.mrb[0].mxu0
  %v962 = vadd.f32 %v158, %v961
  %v963 = vpop.f32.mrb[0].mxu0
  %964 = vmatprep.mubr.f32.mxu0 0.0
  %965 = vmatmul.mubr.f32.gmra.mrb[0].mxu0 %v375
  %v966 = vpop.f32.mrb[0].mxu0
  %v967 = vadd.f32 %v158, %v966
  %v968 = vpop.f32.mrb[0].mxu0
  %969 = vmatprep.mubr.f32.mxu0 0.0
  %970 = vmatmul.mubr.f32.gmra.mrb[0].mxu0 %v378
  %v971 = vpop.f32.mrb[0].mxu0
  %v972 = vadd.f32 %v158, %v971
  %v973 = vpop.f32.mrb[0].mxu0
  %974 = vmatprep.mubr.f32.mxu0 0.0
  %975 = vmatmul.mubr.f32.gmra.mrb[0].mxu0 %v381
  %v976 = vpop.f32.mrb[0].mxu0
  %v977 = vadd.f32 %v158, %v976
  %v978 = vpop.f32.mrb[0].mxu0
  %979 = vmatprep.mubr.f32.mxu0 0.0
  %980 = vmatmul.mubr.f32.gmra.mrb[0].mxu0 %v384
  %v981 = vpop.f32.mrb[0].mxu0
  %v982 = vadd.f32 %v158, %v981
  %v983 = vpop.f32.mrb[0].mxu0
  %984 = vmatprep.mubr.f32.mxu0 0.0
  %985 = vmatmul.mubr.f32.gmra.mrb[0].mxu0 %v387
  %v986 = vpop.f32.mrb[0].mxu0
  %v987 = vadd.f32 %v158, %v986
  %v988 = vpop.f32.mrb[0].mxu0
  %989 = vmatprep.mubr.f32.mxu0 0.0
  %990 = vmatmul.mubr.f32.gmra.mrb[0].mxu0 %v390
  %v991 = vpop.f32.mrb[0].mxu0
  %v992 = vadd.f32 %v158, %v991
  %v993 = vpop.f32.mrb[0].mxu0
  %994 = vmatprep.mubr.f32.mxu0 0.0
  %995 = vmatmul.mubr.f32.gmra.mrb[0].mxu0 %v393
  %v996 = vpop.f32.mrb[0].mxu0
  %v997 = vadd.f32 %v158, %v996
  %v998 = vpop.f32.mrb[0].mxu0
  %999 = vmatprep.mubr.f32.mxu0 0.0
  %1000 = vmatmul.mubr.f32.gmra.mrb[0].mxu0 %v396
  %v1001 = vpop.f32.mrb[0].mxu0
  %v1002 = vadd.f32 %v158, %v1001
  %v1003 = vpop.f32.mrb[0].mxu0
  %1004 = vmatprep.mubr.f32.mxu0 0.0
  %1005 = vmatmul.mubr.f32.gmra.mrb[0].mxu0 %v399
  %v1006 = vpop.f32.mrb[0].mxu0
  %v1007 = vadd.f32 %v158, %v1006
  %v1008 = vpop.f32.mrb[0].mxu0
  %1009 = vmatprep.mubr.f32.mxu0 0.0
  %1010 = vmatmul.mubr.f32.gmra.mrb[0].mxu0 %v402
  %v1011 = vpop.f32.mrb[0].mxu0
  %v1012 = vadd.f32 %v158, %v1011
  %v1013 = vpop.f32.mrb[0].mxu0
  %1014 = vmatprep.mubr.f32.mxu0 0.0
  %1015 = vmatmul.mubr.f32.gmra.mrb[0].mxu0 %v405
  %v1016 = vpop.f32.mrb[0].mxu0
  %v1017 = vadd.f32 %v158, %v1016
  %v1018 = vpop.f32.mrb[0].mxu0
  %1019 = vmatprep.mubr.f32.mxu0 0.0
  %1020 = vmatmul.mubr.f32.gmra.mrb[0].mxu0 %v408
  %v1021 = vpop.f32.mrb[0].mxu0
  %v1022 = vadd.f32 %v158, %v1021
  %v1023 = vpop.f32.mrb[0].mxu0
  %1024 = vmatprep.mubr.f32.mxu0 0.0
  %1025 = vmatmul.mubr.f32.gmra.mrb[0].mxu0 %v411
  %v1026 = vpop.f32.mrb[0].mxu0
  %v1027 = vadd.f32 %v158, %v1026
  %v1028 = vpop.f32.mrb[0].mxu0
  %1029 = vmatprep.mubr.f32.mxu0 0.0
  %1030 = vmatmul.mubr.f32.gmra.mrb[0].mxu0 %v414
  %v1031 = vpop.f32.mrb[0].mxu0
  %v1032 = vadd.f32 %v158, %v1031
  %v1033 = vpop.f32.mrb[0].mxu0
  %1034 = vmatprep.mubr.f32.mxu0 0.0
  %1035 = vmatmul.mubr.f32.gmra.mrb[0].mxu0 %v417
  %v1036 = vpop.f32.mrb[0].mxu0
  %v1037 = vadd.f32 %v158, %v1036
  %v1038 = vpop.f32.mrb[0].mxu0
  %1039 = vmatprep.mubr.f32.mxu0 0.0
  %1040 = vmatmul.mubr.f32.gmra.mrb[0].mxu0 %v420
  %v1041 = vpop.f32.mrb[0].mxu0
  %v1042 = vadd.f32 %v158, %v1041
  %v1043 = vpop.f32.mrb[0].mxu0
  %1044 = vmatprep.mubr.f32.mxu0 0.0
  %1045 = vmatmul.mubr.f32.gmra.mrb[0].mxu0 %v423
  %v1046 = vpop.f32.mrb[0].mxu0
  %v1047 = vadd.f32 %v158, %v1046
  %v1048 = vpop.f32.mrb[0].mxu0
  %1049 = vmatprep.mubr.f32.mxu0 0.0
  %1050 = vmatmul.mubr.f32.gmra.mrb[0].mxu0 %v426
  %v1051 = vpop.f32.mrb[0].mxu0
  %v1052 = vadd.f32 %v158, %v1051
  %v1053 = vpop.f32.mrb[0].mxu0
  %1054 = vmatprep.mubr.f32.mxu0 0.0
  %1055 = vmatmul.mubr.f32.gmra.mrb[0].mxu0 %v429
  %v1056 = vpop.f32.mrb[0].mxu0
  %v1057 = vadd.f32 %v158, %v1056
  %v1058 = vpop.f32.mrb[0].mxu0
  %1059 = vmatprep.mubr.f32.mxu0 0.0
  %1060 = vmatmul.mubr.f32.gmra.mrb[0].mxu0 %v432
  %v1061 = vpop.f32.mrb[0].mxu0
  %v1062 = vadd.f32 %v158, %v1061
  %v1063 = vpop.f32.mrb[0].mxu0
  %1064 = vmatprep.mubr.f32.mxu0 0.0
  %1065 = vmatmul.mubr.f32.gmra.mrb[0].mxu0 %v435
  %v1066 = vpop.f32.mrb[0].mxu0
  %v1067 = vadd.f32 %v158, %v1066
  %v1068 = vpop.f32.mrb[0].mxu0
  %1069 = vmatprep.mubr.f32.mxu0 0.0
  %1070 = vmatmul.mubr.f32.gmra.mrb[0].mxu0 %v438
  %v1071 = vpop.f32.mrb[0].mxu0
  %v1072 = vadd.f32 %v158, %v1071
  %v1073 = vpop.f32.mrb[0].mxu0
  %1074 = vmatprep.mubr.f32.mxu0 0.0
  %1075 = vmatmul.mubr.f32.gmra.mrb[0].mxu0 %v441
  %v1076 = vpop.f32.mrb[0].mxu0
  %v1077 = vadd.f32 %v158, %v1076
  %v1078 = vpop.f32.mrb[0].mxu0
  %1079 = vmatprep.mubr.f32.mxu0 0.0
  %1080 = vmatmul.mubr.f32.gmra.mrb[0].mxu0 %v444
  %v1081 = vpop.f32.mrb[0].mxu0
  %v1082 = vadd.f32 %v158, %v1081
  %v1083 = vpop.f32.mrb[0].mxu0
  %1084 = vmatprep.mubr.f32.mxu0 0.0
  %1085 = vmatmul.mubr.f32.gmra.mrb[0].mxu0 %v447
  %v1086 = vpop.f32.mrb[0].mxu0
  %v1087 = vadd.f32 %v158, %v1086
  %v1088 = vpop.f32.mrb[0].mxu0
  %1089 = vmatprep.mubr.f32.mxu0 0.0
  %1090 = vmatmul.mubr.f32.gmra.mrb[0].mxu0 %v450
  %v1091 = vpop.f32.mrb[0].mxu0
  %v1092 = vadd.f32 %v158, %v1091
  %v1093 = vpop.f32.mrb[0].mxu0
  %1094 = vmatprep.mubr.f32.mxu0 0.0
  %1095 = vmatmul.mubr.f32.gmra.mrb[0].mxu0 %v453
  %v1096 = vpop.f32.mrb[0].mxu0
  %v1097 = vadd.f32 %v158, %v1096
  %v1098 = vpop.f32.mrb[0].mxu0
  %1099 = vmatprep.mubr.f32.mxu0 0.0
  %1100 = vmatmul.mubr.f32.gmra.mrb[0].mxu0 %v456
  %v1101 = vpop.f32.mrb[0].mxu0
  %v1102 = vadd.f32 %v158, %v1101
  %v1103 = vpop.f32.mrb[0].mxu0
  %1104 = vmatprep.mubr.f32.mxu0 0.0
  %1105 = vmatmul.mubr.f32.gmra.mrb[0].mxu0 %v459
  %v1106 = vpop.f32.mrb[0].mxu0
  %v1107 = vadd.f32 %v158, %v1106
  %v1108 = vpop.f32.mrb[0].mxu0
  %1109 = vmatprep.mubr.f32.mxu0 0.0
  %1110 = vmatmul.mubr.f32.gmra.mrb[0].mxu0 %v462
  %v1111 = vpop.f32.mrb[0].mxu0
  %v1112 = vadd.f32 %v158, %v1111
  %v1113 = vpop.f32.mrb[0].mxu0
  %1114 = vmatprep.mubr.f32.mxu0 0.0
  %1115 = vmatmul.mubr.f32.gmra.mrb[0].mxu0 %v465
  %v1116 = vpop.f32.mrb[0].mxu0
  %v1117 = vadd.f32 %v158, %v1116
  %v1118 = vpop.f32.mrb[0].mxu0
  %1119 = vmatprep.mubr.f32.mxu0 0.0
  %1120 = vmatmul.mubr.f32.gmra.mrb[0].mxu0 %v468
  %v1121 = vpop.f32.mrb[0].mxu0
  %v1122 = vadd.f32 %v158, %v1121
  %v1123 = vpop.f32.mrb[0].mxu0
  %1124 = vmatprep.mubr.f32.mxu0 0.0
  %1125 = vmatmul.mubr.f32.gmra.mrb[0].mxu0 %v471
  %v1126 = vpop.f32.mrb[0].mxu0
  %v1127 = vadd.f32 %v158, %v1126
  %v1128 = vpop.f32.mrb[0].mxu0
  %1129 = vmatprep.mubr.f32.mxu0 0.0
  %1130 = vmatmul.mubr.f32.gmra.mrb[0].mxu0 %v474
  %v1131 = vpop.f32.mrb[0].mxu0
  %v1132 = vadd.f32 %v158, %v1131
  %v1133 = vpop.f32.mrb[0].mxu0
  %1134 = vmatprep.mubr.f32.mxu0 0.0
  %1135 = vmatmul.mubr.f32.gmra.mrb[0].mxu0 %v477
  %v1136 = vpop.f32.mrb[0].mxu0
  %v1137 = vadd.f32 %v158, %v1136
  %v1138 = vpop.f32.mrb[0].mxu0
  %1139 = vmatprep.mubr.f32.mxu0 0.0
  %1140 = vmatmul.mubr.f32.gmra.mrb[0].mxu0 %v480
  %v1141 = vpop.f32.mrb[0].mxu0
  %v1142 = vadd.f32 %v158, %v1141
  %v1143 = vpop.f32.mrb[0].mxu0
  %1144 = vmatprep.mubr.f32.mxu0 0.0
  %1145 = vmatmul.mubr.f32.gmra.mrb[0].mxu0 %v483
  %v1146 = vpop.f32.mrb[0].mxu0
  %v1147 = vadd.f32 %v158, %v1146
  %v1148 = vpop.f32.mrb[0].mxu0
  %1149 = vmatprep.mubr.f32.mxu0 0.0
  %1150 = vmatmul.mubr.f32.gmra.mrb[0].mxu0 %v486
  %v1151 = vpop.f32.mrb[0].mxu0
  %v1152 = vadd.f32 %v158, %v1151
  %v1153 = vpop.f32.mrb[0].mxu0
  %1154 = vmatprep.mubr.f32.mxu0 0.0
  %1155 = vmatmul.mubr.f32.gmra.mrb[0].mxu0 %v489
  %v1156 = vpop.f32.mrb[0].mxu0
  %v1157 = vadd.f32 %v158, %v1156
  %v1158 = vpop.f32.mrb[0].mxu0
  %1159 = vmatprep.mubr.f32.mxu0 0.0
  %1160 = vmatmul.mubr.f32.gmra.mrb[0].mxu0 %v492
  %v1161 = vpop.f32.mrb[0].mxu0
  %v1162 = vadd.f32 %v158, %v1161
  %v1163 = vpop.f32.mrb[0].mxu0
  %1164 = vmatprep.mubr.f32.mxu0 0.0
  %1165 = vmatmul.mubr.f32.gmra.mrb[0].mxu0 %v495
  %v1166 = vpop.f32.mrb[0].mxu0
  %v1167 = vadd.f32 %v158, %v1166
  %v1168 = vpop.f32.mrb[0].mxu0
  %1169 = vmatprep.mubr.f32.mxu0 0.0
  %1170 = vmatmul.mubr.f32.gmra.mrb[0].mxu0 %v498
  %v1171 = vpop.f32.mrb[0].mxu0
  %v1172 = vadd.f32 %v158, %v1171
  %v1173 = vpop.f32.mrb[0].mxu0
  %1174 = vmatprep.mubr.f32.mxu0 0.0
  %1175 = vmatmul.mubr.f32.gmra.mrb[0].mxu0 %v501
  %v1176 = vpop.f32.mrb[0].mxu0
  %v1177 = vadd.f32 %v158, %v1176
  %v1178 = vpop.f32.mrb[0].mxu0
  %1179 = vmatprep.mubr.f32.mxu0 0.0
  %1180 = vmatmul.mubr.f32.gmra.mrb[0].mxu0 %v504
  %v1181 = vpop.f32.mrb[0].mxu0
  %v1182 = vadd.f32 %v158, %v1181
  %v1183 = vpop.f32.mrb[0].mxu0
  %1184 = vmatprep.mubr.f32.mxu0 0.0
  %1185 = vmatmul.mubr.f32.gmra.mrb[0].mxu0 %v507
  %v1186 = vpop.f32.mrb[0].mxu0
  %v1187 = vadd.f32 %v158, %v1186
  %v1188 = vpop.f32.mrb[0].mxu0
  %1189 = vmatprep.mubr.f32.mxu0 0.0
  %1190 = vmatmul.mubr.f32.gmra.mrb[0].mxu0 %v510
  %v1191 = vpop.f32.mrb[0].mxu0
  %v1192 = vadd.f32 %v158, %v1191
  %v1193 = vpop.f32.mrb[0].mxu0
  %1194 = vmatprep.mubr.f32.mxu0 0.0
  %1195 = vmatmul.mubr.f32.gmra.mrb[0].mxu0 %v513
  %v1196 = vpop.f32.mrb[0].mxu0
  %v1197 = vadd.f32 %v158, %v1196
  %v1198 = vpop.f32.mrb[0].mxu0
  %1199 = vmatprep.mubr.f32.mxu0 0.0
  %1200 = vmatmul.mubr.f32.gmra.mrb[0].mxu0 %v516
  %v1201 = vpop.f32.mrb[0].mxu0
  %v1202 = vadd.f32 %v158, %v1201
  %v1203 = vpop.f32.mrb[0].mxu0
  %1204 = vmatprep.mubr.f32.mxu0 0.0
  %1205 = vmatmul.mubr.f32.gmra.mrb[0].mxu0 %v519
  %v1206 = vpop.f32.mrb[0].mxu0
  %v1207 = vadd.f32 %v158, %v1206
  %v1208 = vpop.f32.mrb[0].mxu0
  %1209 = vmatprep.mubr.f32.mxu0 0.0
  %1210 = vmatmul.mubr.f32.gmra.mrb[0].mxu0 %v522
  %v1211 = vpop.f32.mrb[0].mxu0
  %v1212 = vadd.f32 %v158, %v1211
  %v1213 = vpop.f32.mrb[0].mxu0
  %1214 = vmatprep.mubr.f32.mxu0 0.0
  %1215 = vmatmul.mubr.f32.gmra.mrb[0].mxu0 %v525
  %v1216 = vpop.f32.mrb[0].mxu0
  %v1217 = vadd.f32 %v158, %v1216
  %v1218 = vpop.f32.mrb[0].mxu0
  %1219 = vmatprep.mubr.f32.mxu0 0.0
  %1220 = vmatmul.mubr.f32.gmra.mrb[0].mxu0 %v528
  %v1221 = vpop.f32.mrb[0].mxu0
  %v1222 = vadd.f32 %v158, %v1221
  %v1223 = vpop.f32.mrb[0].mxu0
  %1224 = vmatprep.mubr.f32.mxu0 0.0
  %1225 = vmatmul.mubr.f32.gmra.mrb[0].mxu0 %v531
  %v1226 = vpop.f32.mrb[0].mxu0
  %v1227 = vadd.f32 %v158, %v1226
  %v1228 = vpop.f32.mrb[0].mxu0
  %1229 = vmatprep.mubr.f32.mxu0 0.0
  %1230 = vmatmul.mubr.f32.gmra.mrb[0].mxu0 %v534
  %v1231 = vpop.f32.mrb[0].mxu0
  %v1232 = vadd.f32 %v158, %v1231
  %v1233 = vpop.f32.mrb[0].mxu0
  %1234 = vmatprep.mubr.f32.mxu0 0.0
  %1235 = vmatmul.mubr.f32.gmra.mrb[0].mxu0 %v537
  %v1236 = vpop.f32.mrb[0].mxu0
  %v1237 = vadd.f32 %v158, %v1236
  %v1238 = vpop.f32.mrb[0].mxu0
  %1239 = vmatprep.mubr.f32.mxu0 0.0
  %1240 = vmatmul.mubr.f32.gmra.mrb[0].mxu0 %v540
  %v1241 = vpop.f32.mrb[0].mxu0
  %v1242 = vadd.f32 %v158, %v1241
  %v1243 = vpop.f32.mrb[0].mxu0
  %1244 = vmatprep.mubr.f32.mxu0 0.0
  %1245 = vmatmul.mubr.f32.gmra.mrb[0].mxu0 %v543
  %v1246 = vpop.f32.mrb[0].mxu0
  %v1247 = vadd.f32 %v158, %v1246
  %v1248 = vpop.f32.mrb[0].mxu0
  %1249 = vdwg.mxu0
  %v1250 = vmax.f32 %v612, 0.0
  %v1251 = vmax.f32 %v617, 0.0
  %v1252 = vmax.f32 %v622, 0.0
  %v1253 = vmax.f32 %v627, 0.0
  %v1254 = vmax.f32 %v632, 0.0
  %v1255 = vmax.f32 %v637, 0.0
  %v1256 = vmax.f32 %v642, 0.0
  %v1257 = vmax.f32 %v647, 0.0
  %v1258 = vmax.f32 %v652, 0.0
  %v1259 = vmax.f32 %v657, 0.0
  %v1260 = vmax.f32 %v662, 0.0
  %v1261 = vmax.f32 %v667, 0.0
  %v1262 = vmax.f32 %v672, 0.0
  %v1263 = vmax.f32 %v677, 0.0
  %v1264 = vmax.f32 %v682, 0.0
  %v1265 = vmax.f32 %v687, 0.0
  %v1266 = vmax.f32 %v692, 0.0
  %v1267 = vmax.f32 %v697, 0.0
  %v1268 = vmax.f32 %v702, 0.0
  %v1269 = vmax.f32 %v707, 0.0
  %v1270 = vmax.f32 %v712, 0.0
  %v1271 = vmax.f32 %v717, 0.0
  %v1272 = vmax.f32 %v722, 0.0
  %v1273 = vmax.f32 %v727, 0.0
  %v1274 = vmax.f32 %v732, 0.0
  %v1275 = vmax.f32 %v737, 0.0
  %v1276 = vmax.f32 %v742, 0.0
  %v1277 = vmax.f32 %v747, 0.0
  %v1278 = vmax.f32 %v752, 0.0
  %v1279 = vmax.f32 %v757, 0.0
  %v1280 = vmax.f32 %v762, 0.0
  %v1281 = vmax.f32 %v767, 0.0
  %v1282 = vmax.f32 %v772, 0.0
  %v1283 = vmax.f32 %v777, 0.0
  %v1284 = vmax.f32 %v782, 0.0
  %v1285 = vmax.f32 %v787, 0.0
  %v1286 = vmax.f32 %v792, 0.0
  %v1287 = vmax.f32 %v797, 0.0
  %v1288 = vmax.f32 %v802, 0.0
  %v1289 = vmax.f32 %v807, 0.0
  %v1290 = vmax.f32 %v812, 0.0
  %v1291 = vmax.f32 %v817, 0.0
  %v1292 = vmax.f32 %v822, 0.0
  %v1293 = vmax.f32 %v827, 0.0
  %v1294 = vmax.f32 %v832, 0.0
  %v1295 = vmax.f32 %v837, 0.0
  %v1296 = vmax.f32 %v842, 0.0
  %v1297 = vmax.f32 %v847, 0.0
  %v1298 = vmax.f32 %v852, 0.0
  %v1299 = vmax.f32 %v857, 0.0
  %v1300 = vmax.f32 %v862, 0.0
  %v1301 = vmax.f32 %v867, 0.0
  %v1302 = vmax.f32 %v872, 0.0
  %v1303 = vmax.f32 %v877, 0.0
  %v1304 = vmax.f32 %v882, 0.0
  %v1305 = vmax.f32 %v887, 0.0
  %v1306 = vmax.f32 %v892, 0.0
  %v1307 = vmax.f32 %v897, 0.0
  %v1308 = vmax.f32 %v902, 0.0
  %v1309 = vmax.f32 %v907, 0.0
  %v1310 = vmax.f32 %v912, 0.0
  %v1311 = vmax.f32 %v917, 0.0
  %v1312 = vmax.f32 %v922, 0.0
  %v1313 = vmax.f32 %v927, 0.0
  %v1314 = vmax.f32 %v932, 0.0
  %v1315 = vmax.f32 %v937, 0.0
  %v1316 = vmax.f32 %v942, 0.0
  %v1317 = vmax.f32 %v947, 0.0
  %v1318 = vmax.f32 %v952, 0.0
  %v1319 = vmax.f32 %v957, 0.0
  %v1320 = vmax.f32 %v962, 0.0
  %v1321 = vmax.f32 %v967, 0.0
  %v1322 = vmax.f32 %v972, 0.0
  %v1323 = vmax.f32 %v977, 0.0
  %v1324 = vmax.f32 %v982, 0.0
  %v1325 = vmax.f32 %v987, 0.0
  %v1326 = vmax.f32 %v992, 0.0
  %v1327 = vmax.f32 %v997, 0.0
  %v1328 = vmax.f32 %v1002, 0.0
  %v1329 = vmax.f32 %v1007, 0.0
  %v1330 = vmax.f32 %v1012, 0.0
  %v1331 = vmax.f32 %v1017, 0.0
  %v1332 = vmax.f32 %v1022, 0.0
  %v1333 = vmax.f32 %v1027, 0.0
  %v1334 = vmax.f32 %v1032, 0.0
  %v1335 = vmax.f32 %v1037, 0.0
  %v1336 = vmax.f32 %v1042, 0.0
  %v1337 = vmax.f32 %v1047, 0.0
  %v1338 = vmax.f32 %v1052, 0.0
  %v1339 = vmax.f32 %v1057, 0.0
  %v1340 = vmax.f32 %v1062, 0.0
  %v1341 = vmax.f32 %v1067, 0.0
  %v1342 = vmax.f32 %v1072, 0.0
  %v1343 = vmax.f32 %v1077, 0.0
  %v1344 = vmax.f32 %v1082, 0.0
  %v1345 = vmax.f32 %v1087, 0.0
  %v1346 = vmax.f32 %v1092, 0.0
  %v1347 = vmax.f32 %v1097, 0.0
  %v1348 = vmax.f32 %v1102, 0.0
  %v1349 = vmax.f32 %v1107, 0.0
  %v1350 = vmax.f32 %v1112, 0.0
  %v1351 = vmax.f32 %v1117, 0.0
  %v1352 = vmax.f32 %v1122, 0.0
  %v1353 = vmax.f32 %v1127, 0.0
  %v1354 = vmax.f32 %v1132, 0.0
  %v1355 = vmax.f32 %v1137, 0.0
  %v1356 = vmax.f32 %v1142, 0.0
  %v1357 = vmax.f32 %v1147, 0.0
  %v1358 = vmax.f32 %v1152, 0.0
  %v1359 = vmax.f32 %v1157, 0.0
  %v1360 = vmax.f32 %v1162, 0.0
  %v1361 = vmax.f32 %v1167, 0.0
  %v1362 = vmax.f32 %v1172, 0.0
  %v1363 = vmax.f32 %v1177, 0.0
  %v1364 = vmax.f32 %v1182, 0.0
  %v1365 = vmax.f32 %v1187, 0.0
  %v1366 = vmax.f32 %v1192, 0.0
  %v1367 = vmax.f32 %v1197, 0.0
  %v1368 = vmax.f32 %v1202, 0.0
  %v1369 = vmax.f32 %v1207, 0.0
  %v1370 = vmax.f32 %v1212, 0.0
  %v1371 = vmax.f32 %v1217, 0.0
  %v1372 = vmax.f32 %v1222, 0.0
  %v1373 = vmax.f32 %v1227, 0.0
  %v1374 = vmax.f32 %v1232, 0.0
  %v1375 = vmax.f32 %v1237, 0.0
  %v1376 = vmax.f32 %v1242, 0.0
  %v1377 = vmax.f32 %v1247, 0.0
  %v1378 = vld [vmem:[%s3] sm:$0x1]
  %v1380 = vlaneseq
  %v1381 = vshrl.u32 %v1380, 7
  %v1382 = vsub.s32 0, %v1381
  %v1383 = vrot.slane %v1378, %v1382
  %v1385 = vmul.f32 %v1250, %v1383
  %v1386 = vmul.f32 %v1251, %v1383
  %v1387 = vmul.f32 %v1252, %v1383
  %v1388 = vmul.f32 %v1253, %v1383
  %v1389 = vmul.f32 %v1254, %v1383
  %v1390 = vmul.f32 %v1255, %v1383
  %v1391 = vmul.f32 %v1256, %v1383
  %v1392 = vmul.f32 %v1257, %v1383
  %v1393 = vmul.f32 %v1258, %v1383
  %v1394 = vmul.f32 %v1259, %v1383
  %v1395 = vmul.f32 %v1260, %v1383
  %v1396 = vmul.f32 %v1261, %v1383
  %v1397 = vmul.f32 %v1262, %v1383
  %v1398 = vmul.f32 %v1263, %v1383
  %v1399 = vmul.f32 %v1264, %v1383
  %v1400 = vmul.f32 %v1265, %v1383
  %v1401 = vmul.f32 %v1266, %v1383
  %v1402 = vmul.f32 %v1267, %v1383
  %v1403 = vmul.f32 %v1268, %v1383
  %v1404 = vmul.f32 %v1269, %v1383
  %v1405 = vmul.f32 %v1270, %v1383
  %v1406 = vmul.f32 %v1271, %v1383
  %v1407 = vmul.f32 %v1272, %v1383
  %v1408 = vmul.f32 %v1273, %v1383
  %v1409 = vmul.f32 %v1274, %v1383
  %v1410 = vmul.f32 %v1275, %v1383
  %v1411 = vmul.f32 %v1276, %v1383
  %v1412 = vmul.f32 %v1277, %v1383
  %v1413 = vmul.f32 %v1278, %v1383
  %v1414 = vmul.f32 %v1279, %v1383
  %v1415 = vmul.f32 %v1280, %v1383
  %v1416 = vmul.f32 %v1281, %v1383
  %v1417 = vmul.f32 %v1282, %v1383
  %v1418 = vmul.f32 %v1283, %v1383
  %v1419 = vmul.f32 %v1284, %v1383
  %v1420 = vmul.f32 %v1285, %v1383
  %v1421 = vmul.f32 %v1286, %v1383
  %v1422 = vmul.f32 %v1287, %v1383
  %v1423 = vmul.f32 %v1288, %v1383
  %v1424 = vmul.f32 %v1289, %v1383
  %v1425 = vmul.f32 %v1290, %v1383
  %v1426 = vmul.f32 %v1291, %v1383
  %v1427 = vmul.f32 %v1292, %v1383
  %v1428 = vmul.f32 %v1293, %v1383
  %v1429 = vmul.f32 %v1294, %v1383
  %v1430 = vmul.f32 %v1295, %v1383
  %v1431 = vmul.f32 %v1296, %v1383
  %v1432 = vmul.f32 %v1297, %v1383
  %v1433 = vmul.f32 %v1298, %v1383
  %v1434 = vmul.f32 %v1299, %v1383
  %v1435 = vmul.f32 %v1300, %v1383
  %v1436 = vmul.f32 %v1301, %v1383
  %v1437 = vmul.f32 %v1302, %v1383
  %v1438 = vmul.f32 %v1303, %v1383
  %v1439 = vmul.f32 %v1304, %v1383
  %v1440 = vmul.f32 %v1305, %v1383
  %v1441 = vmul.f32 %v1306, %v1383
  %v1442 = vmul.f32 %v1307, %v1383
  %v1443 = vmul.f32 %v1308, %v1383
  %v1444 = vmul.f32 %v1309, %v1383
  %v1445 = vmul.f32 %v1310, %v1383
  %v1446 = vmul.f32 %v1311, %v1383
  %v1447 = vmul.f32 %v1312, %v1383
  %v1448 = vmul.f32 %v1313, %v1383
  %v1449 = vmul.f32 %v1314, %v1383
  %v1450 = vmul.f32 %v1315, %v1383
  %v1451 = vmul.f32 %v1316, %v1383
  %v1452 = vmul.f32 %v1317, %v1383
  %v1453 = vmul.f32 %v1318, %v1383
  %v1454 = vmul.f32 %v1319, %v1383
  %v1455 = vmul.f32 %v1320, %v1383
  %v1456 = vmul.f32 %v1321, %v1383
  %v1457 = vmul.f32 %v1322, %v1383
  %v1458 = vmul.f32 %v1323, %v1383
  %v1459 = vmul.f32 %v1324, %v1383
  %v1460 = vmul.f32 %v1325, %v1383
  %v1461 = vmul.f32 %v1326, %v1383
  %v1462 = vmul.f32 %v1327, %v1383
  %v1463 = vmul.f32 %v1328, %v1383
  %v1464 = vmul.f32 %v1329, %v1383
  %v1465 = vmul.f32 %v1330, %v1383
  %v1466 = vmul.f32 %v1331, %v1383
  %v1467 = vmul.f32 %v1332, %v1383
  %v1468 = vmul.f32 %v1333, %v1383
  %v1469 = vmul.f32 %v1334, %v1383
  %v1470 = vmul.f32 %v1335, %v1383
  %v1471 = vmul.f32 %v1336, %v1383
  %v1472 = vmul.f32 %v1337, %v1383
  %v1473 = vmul.f32 %v1338, %v1383
  %v1474 = vmul.f32 %v1339, %v1383
  %v1475 = vmul.f32 %v1340, %v1383
  %v1476 = vmul.f32 %v1341, %v1383
  %v1477 = vmul.f32 %v1342, %v1383
  %v1478 = vmul.f32 %v1343, %v1383
  %v1479 = vmul.f32 %v1344, %v1383
  %v1480 = vmul.f32 %v1345, %v1383
  %v1481 = vmul.f32 %v1346, %v1383
  %v1482 = vmul.f32 %v1347, %v1383
  %v1483 = vmul.f32 %v1348, %v1383
  %v1484 = vmul.f32 %v1349, %v1383
  %v1485 = vmul.f32 %v1350, %v1383
  %v1486 = vmul.f32 %v1351, %v1383
  %v1487 = vmul.f32 %v1352, %v1383
  %v1488 = vmul.f32 %v1353, %v1383
  %v1489 = vmul.f32 %v1354, %v1383
  %v1490 = vmul.f32 %v1355, %v1383
  %v1491 = vmul.f32 %v1356, %v1383
  %v1492 = vmul.f32 %v1357, %v1383
  %v1493 = vmul.f32 %v1358, %v1383
  %v1494 = vmul.f32 %v1359, %v1383
  %v1495 = vmul.f32 %v1360, %v1383
  %v1496 = vmul.f32 %v1361, %v1383
  %v1497 = vmul.f32 %v1362, %v1383
  %v1498 = vmul.f32 %v1363, %v1383
  %v1499 = vmul.f32 %v1364, %v1383
  %v1500 = vmul.f32 %v1365, %v1383
  %v1501 = vmul.f32 %v1366, %v1383
  %v1502 = vmul.f32 %v1367, %v1383
  %v1503 = vmul.f32 %v1368, %v1383
  %v1504 = vmul.f32 %v1369, %v1383
  %v1505 = vmul.f32 %v1370, %v1383
  %v1506 = vmul.f32 %v1371, %v1383
  %v1507 = vmul.f32 %v1372, %v1383
  %v1508 = vmul.f32 %v1373, %v1383
  %v1509 = vmul.f32 %v1374, %v1383
  %v1510 = vmul.f32 %v1375, %v1383
  %v1511 = vmul.f32 %v1376, %v1383
  %v1512 = vmul.f32 %v1377, %v1383
  %vm1513 = vcmask 523264
  %v1514 = vsel %vm1513, %v1385, 0.0
  %1515 = vadd.xlane.f32.xlu0 %v1514
  %v1516 = vpop.xlane.xlu0 %1515
  %v1517 = vsel %vm1513, %v1386, 0.0
  %1518 = vadd.xlane.f32.xlu0 %v1517
  %v1519 = vpop.xlane.xlu0 %1518
  %v1520 = vsel %vm1513, %v1387, 0.0
  %1521 = vadd.xlane.f32.xlu0 %v1520
  %v1522 = vpop.xlane.xlu0 %1521
  %v1523 = vsel %vm1513, %v1388, 0.0
  %1524 = vadd.xlane.f32.xlu0 %v1523
  %v1525 = vpop.xlane.xlu0 %1524
  %v1526 = vsel %vm1513, %v1389, 0.0
  %1527 = vadd.xlane.f32.xlu0 %v1526
  %v1528 = vpop.xlane.xlu0 %1527
  %v1529 = vsel %vm1513, %v1390, 0.0
  %1530 = vadd.xlane.f32.xlu0 %v1529
  %v1531 = vpop.xlane.xlu0 %1530
  %v1532 = vsel %vm1513, %v1391, 0.0
  %1533 = vadd.xlane.f32.xlu0 %v1532
  %v1534 = vpop.xlane.xlu0 %1533
  %v1535 = vsel %vm1513, %v1392, 0.0
  %1536 = vadd.xlane.f32.xlu0 %v1535
  %v1537 = vpop.xlane.xlu0 %1536
  %v1538 = vsel %vm1513, %v1393, 0.0
  %1539 = vadd.xlane.f32.xlu0 %v1538
  %v1540 = vpop.xlane.xlu0 %1539
  %v1541 = vsel %vm1513, %v1394, 0.0
  %1542 = vadd.xlane.f32.xlu0 %v1541
  %v1543 = vpop.xlane.xlu0 %1542
  %v1544 = vsel %vm1513, %v1395, 0.0
  %1545 = vadd.xlane.f32.xlu0 %v1544
  %v1546 = vpop.xlane.xlu0 %1545
  %v1547 = vsel %vm1513, %v1396, 0.0
  %1548 = vadd.xlane.f32.xlu0 %v1547
  %v1549 = vpop.xlane.xlu0 %1548
  %v1550 = vsel %vm1513, %v1397, 0.0
  %1551 = vadd.xlane.f32.xlu0 %v1550
  %v1552 = vpop.xlane.xlu0 %1551
  %v1553 = vsel %vm1513, %v1398, 0.0
  %1554 = vadd.xlane.f32.xlu0 %v1553
  %v1555 = vpop.xlane.xlu0 %1554
  %v1556 = vsel %vm1513, %v1399, 0.0
  %1557 = vadd.xlane.f32.xlu0 %v1556
  %v1558 = vpop.xlane.xlu0 %1557
  %v1559 = vsel %vm1513, %v1400, 0.0
  %1560 = vadd.xlane.f32.xlu0 %v1559
  %v1561 = vpop.xlane.xlu0 %1560
  %v1562 = vsel %vm1513, %v1401, 0.0
  %1563 = vadd.xlane.f32.xlu0 %v1562
  %v1564 = vpop.xlane.xlu0 %1563
  %v1565 = vsel %vm1513, %v1402, 0.0
  %1566 = vadd.xlane.f32.xlu0 %v1565
  %v1567 = vpop.xlane.xlu0 %1566
  %v1568 = vsel %vm1513, %v1403, 0.0
  %1569 = vadd.xlane.f32.xlu0 %v1568
  %v1570 = vpop.xlane.xlu0 %1569
  %v1571 = vsel %vm1513, %v1404, 0.0
  %1572 = vadd.xlane.f32.xlu0 %v1571
  %v1573 = vpop.xlane.xlu0 %1572
  %v1574 = vsel %vm1513, %v1405, 0.0
  %1575 = vadd.xlane.f32.xlu0 %v1574
  %v1576 = vpop.xlane.xlu0 %1575
  %v1577 = vsel %vm1513, %v1406, 0.0
  %1578 = vadd.xlane.f32.xlu0 %v1577
  %v1579 = vpop.xlane.xlu0 %1578
  %v1580 = vsel %vm1513, %v1407, 0.0
  %1581 = vadd.xlane.f32.xlu0 %v1580
  %v1582 = vpop.xlane.xlu0 %1581
  %v1583 = vsel %vm1513, %v1408, 0.0
  %1584 = vadd.xlane.f32.xlu0 %v1583
  %v1585 = vpop.xlane.xlu0 %1584
  %v1586 = vsel %vm1513, %v1409, 0.0
  %1587 = vadd.xlane.f32.xlu0 %v1586
  %v1588 = vpop.xlane.xlu0 %1587
  %v1589 = vsel %vm1513, %v1410, 0.0
  %1590 = vadd.xlane.f32.xlu0 %v1589
  %v1591 = vpop.xlane.xlu0 %1590
  %v1592 = vsel %vm1513, %v1411, 0.0
  %1593 = vadd.xlane.f32.xlu0 %v1592
  %v1594 = vpop.xlane.xlu0 %1593
  %v1595 = vsel %vm1513, %v1412, 0.0
  %1596 = vadd.xlane.f32.xlu0 %v1595
  %v1597 = vpop.xlane.xlu0 %1596
  %v1598 = vsel %vm1513, %v1413, 0.0
  %1599 = vadd.xlane.f32.xlu0 %v1598
  %v1600 = vpop.xlane.xlu0 %1599
  %v1601 = vsel %vm1513, %v1414, 0.0
  %1602 = vadd.xlane.f32.xlu0 %v1601
  %v1603 = vpop.xlane.xlu0 %1602
  %v1604 = vsel %vm1513, %v1415, 0.0
  %1605 = vadd.xlane.f32.xlu0 %v1604
  %v1606 = vpop.xlane.xlu0 %1605
  %v1607 = vsel %vm1513, %v1416, 0.0
  %1608 = vadd.xlane.f32.xlu0 %v1607
  %v1609 = vpop.xlane.xlu0 %1608
  %v1610 = vsel %vm1513, %v1417, 0.0
  %1611 = vadd.xlane.f32.xlu0 %v1610
  %v1612 = vpop.xlane.xlu0 %1611
  %v1613 = vsel %vm1513, %v1418, 0.0
  %1614 = vadd.xlane.f32.xlu0 %v1613
  %v1615 = vpop.xlane.xlu0 %1614
  %v1616 = vsel %vm1513, %v1419, 0.0
  %1617 = vadd.xlane.f32.xlu0 %v1616
  %v1618 = vpop.xlane.xlu0 %1617
  %v1619 = vsel %vm1513, %v1420, 0.0
  %1620 = vadd.xlane.f32.xlu0 %v1619
  %v1621 = vpop.xlane.xlu0 %1620
  %v1622 = vsel %vm1513, %v1421, 0.0
  %1623 = vadd.xlane.f32.xlu0 %v1622
  %v1624 = vpop.xlane.xlu0 %1623
  %v1625 = vsel %vm1513, %v1422, 0.0
  %1626 = vadd.xlane.f32.xlu0 %v1625
  %v1627 = vpop.xlane.xlu0 %1626
  %v1628 = vsel %vm1513, %v1423, 0.0
  %1629 = vadd.xlane.f32.xlu0 %v1628
  %v1630 = vpop.xlane.xlu0 %1629
  %v1631 = vsel %vm1513, %v1424, 0.0
  %1632 = vadd.xlane.f32.xlu0 %v1631
  %v1633 = vpop.xlane.xlu0 %1632
  %v1634 = vsel %vm1513, %v1425, 0.0
  %1635 = vadd.xlane.f32.xlu0 %v1634
  %v1636 = vpop.xlane.xlu0 %1635
  %v1637 = vsel %vm1513, %v1426, 0.0
  %1638 = vadd.xlane.f32.xlu0 %v1637
  %v1639 = vpop.xlane.xlu0 %1638
  %v1640 = vsel %vm1513, %v1427, 0.0
  %1641 = vadd.xlane.f32.xlu0 %v1640
  %v1642 = vpop.xlane.xlu0 %1641
  %v1643 = vsel %vm1513, %v1428, 0.0
  %1644 = vadd.xlane.f32.xlu0 %v1643
  %v1645 = vpop.xlane.xlu0 %1644
  %v1646 = vsel %vm1513, %v1429, 0.0
  %1647 = vadd.xlane.f32.xlu0 %v1646
  %v1648 = vpop.xlane.xlu0 %1647
  %v1649 = vsel %vm1513, %v1430, 0.0
  %1650 = vadd.xlane.f32.xlu0 %v1649
  %v1651 = vpop.xlane.xlu0 %1650
  %v1652 = vsel %vm1513, %v1431, 0.0
  %1653 = vadd.xlane.f32.xlu0 %v1652
  %v1654 = vpop.xlane.xlu0 %1653
  %v1655 = vsel %vm1513, %v1432, 0.0
  %1656 = vadd.xlane.f32.xlu0 %v1655
  %v1657 = vpop.xlane.xlu0 %1656
  %v1658 = vsel %vm1513, %v1433, 0.0
  %1659 = vadd.xlane.f32.xlu0 %v1658
  %v1660 = vpop.xlane.xlu0 %1659
  %v1661 = vsel %vm1513, %v1434, 0.0
  %1662 = vadd.xlane.f32.xlu0 %v1661
  %v1663 = vpop.xlane.xlu0 %1662
  %v1664 = vsel %vm1513, %v1435, 0.0
  %1665 = vadd.xlane.f32.xlu0 %v1664
  %v1666 = vpop.xlane.xlu0 %1665
  %v1667 = vsel %vm1513, %v1436, 0.0
  %1668 = vadd.xlane.f32.xlu0 %v1667
  %v1669 = vpop.xlane.xlu0 %1668
  %v1670 = vsel %vm1513, %v1437, 0.0
  %1671 = vadd.xlane.f32.xlu0 %v1670
  %v1672 = vpop.xlane.xlu0 %1671
  %v1673 = vsel %vm1513, %v1438, 0.0
  %1674 = vadd.xlane.f32.xlu0 %v1673
  %v1675 = vpop.xlane.xlu0 %1674
  %v1676 = vsel %vm1513, %v1439, 0.0
  %1677 = vadd.xlane.f32.xlu0 %v1676
  %v1678 = vpop.xlane.xlu0 %1677
  %v1679 = vsel %vm1513, %v1440, 0.0
  %1680 = vadd.xlane.f32.xlu0 %v1679
  %v1681 = vpop.xlane.xlu0 %1680
  %v1682 = vsel %vm1513, %v1441, 0.0
  %1683 = vadd.xlane.f32.xlu0 %v1682
  %v1684 = vpop.xlane.xlu0 %1683
  %v1685 = vsel %vm1513, %v1442, 0.0
  %1686 = vadd.xlane.f32.xlu0 %v1685
  %v1687 = vpop.xlane.xlu0 %1686
  %v1688 = vsel %vm1513, %v1443, 0.0
  %1689 = vadd.xlane.f32.xlu0 %v1688
  %v1690 = vpop.xlane.xlu0 %1689
  %v1691 = vsel %vm1513, %v1444, 0.0
  %1692 = vadd.xlane.f32.xlu0 %v1691
  %v1693 = vpop.xlane.xlu0 %1692
  %v1694 = vsel %vm1513, %v1445, 0.0
  %1695 = vadd.xlane.f32.xlu0 %v1694
  %v1696 = vpop.xlane.xlu0 %1695
  %v1697 = vsel %vm1513, %v1446, 0.0
  %1698 = vadd.xlane.f32.xlu0 %v1697
  %v1699 = vpop.xlane.xlu0 %1698
  %v1700 = vsel %vm1513, %v1447, 0.0
  %1701 = vadd.xlane.f32.xlu0 %v1700
  %v1702 = vpop.xlane.xlu0 %1701
  %v1703 = vsel %vm1513, %v1448, 0.0
  %1704 = vadd.xlane.f32.xlu0 %v1703
  %v1705 = vpop.xlane.xlu0 %1704
  %v1706 = vsel %vm1513, %v1449, 0.0
  %1707 = vadd.xlane.f32.xlu0 %v1706
  %v1708 = vpop.xlane.xlu0 %1707
  %v1709 = vsel %vm1513, %v1450, 0.0
  %1710 = vadd.xlane.f32.xlu0 %v1709
  %v1711 = vpop.xlane.xlu0 %1710
  %v1712 = vsel %vm1513, %v1451, 0.0
  %1713 = vadd.xlane.f32.xlu0 %v1712
  %v1714 = vpop.xlane.xlu0 %1713
  %v1715 = vsel %vm1513, %v1452, 0.0
  %1716 = vadd.xlane.f32.xlu0 %v1715
  %v1717 = vpop.xlane.xlu0 %1716
  %v1718 = vsel %vm1513, %v1453, 0.0
  %1719 = vadd.xlane.f32.xlu0 %v1718
  %v1720 = vpop.xlane.xlu0 %1719
  %v1721 = vsel %vm1513, %v1454, 0.0
  %1722 = vadd.xlane.f32.xlu0 %v1721
  %v1723 = vpop.xlane.xlu0 %1722
  %v1724 = vsel %vm1513, %v1455, 0.0
  %1725 = vadd.xlane.f32.xlu0 %v1724
  %v1726 = vpop.xlane.xlu0 %1725
  %v1727 = vsel %vm1513, %v1456, 0.0
  %1728 = vadd.xlane.f32.xlu0 %v1727
  %v1729 = vpop.xlane.xlu0 %1728
  %v1730 = vsel %vm1513, %v1457, 0.0
  %1731 = vadd.xlane.f32.xlu0 %v1730
  %v1732 = vpop.xlane.xlu0 %1731
  %v1733 = vsel %vm1513, %v1458, 0.0
  %1734 = vadd.xlane.f32.xlu0 %v1733
  %v1735 = vpop.xlane.xlu0 %1734
  %v1736 = vsel %vm1513, %v1459, 0.0
  %1737 = vadd.xlane.f32.xlu0 %v1736
  %v1738 = vpop.xlane.xlu0 %1737
  %v1739 = vsel %vm1513, %v1460, 0.0
  %1740 = vadd.xlane.f32.xlu0 %v1739
  %v1741 = vpop.xlane.xlu0 %1740
  %v1742 = vsel %vm1513, %v1461, 0.0
  %1743 = vadd.xlane.f32.xlu0 %v1742
  %v1744 = vpop.xlane.xlu0 %1743
  %v1745 = vsel %vm1513, %v1462, 0.0
  %1746 = vadd.xlane.f32.xlu0 %v1745
  %v1747 = vpop.xlane.xlu0 %1746
  %v1748 = vsel %vm1513, %v1463, 0.0
  %1749 = vadd.xlane.f32.xlu0 %v1748
  %v1750 = vpop.xlane.xlu0 %1749
  %v1751 = vsel %vm1513, %v1464, 0.0
  %1752 = vadd.xlane.f32.xlu0 %v1751
  %v1753 = vpop.xlane.xlu0 %1752
  %v1754 = vsel %vm1513, %v1465, 0.0
  %1755 = vadd.xlane.f32.xlu0 %v1754
  %v1756 = vpop.xlane.xlu0 %1755
  %v1757 = vsel %vm1513, %v1466, 0.0
  %1758 = vadd.xlane.f32.xlu0 %v1757
  %v1759 = vpop.xlane.xlu0 %1758
  %v1760 = vsel %vm1513, %v1467, 0.0
  %1761 = vadd.xlane.f32.xlu0 %v1760
  %v1762 = vpop.xlane.xlu0 %1761
  %v1763 = vsel %vm1513, %v1468, 0.0
  %1764 = vadd.xlane.f32.xlu0 %v1763
  %v1765 = vpop.xlane.xlu0 %1764
  %v1766 = vsel %vm1513, %v1469, 0.0
  %1767 = vadd.xlane.f32.xlu0 %v1766
  %v1768 = vpop.xlane.xlu0 %1767
  %v1769 = vsel %vm1513, %v1470, 0.0
  %1770 = vadd.xlane.f32.xlu0 %v1769
  %v1771 = vpop.xlane.xlu0 %1770
  %v1772 = vsel %vm1513, %v1471, 0.0
  %1773 = vadd.xlane.f32.xlu0 %v1772
  %v1774 = vpop.xlane.xlu0 %1773
  %v1775 = vsel %vm1513, %v1472, 0.0
  %1776 = vadd.xlane.f32.xlu0 %v1775
  %v1777 = vpop.xlane.xlu0 %1776
  %v1778 = vsel %vm1513, %v1473, 0.0
  %1779 = vadd.xlane.f32.xlu0 %v1778
  %v1780 = vpop.xlane.xlu0 %1779
  %v1781 = vsel %vm1513, %v1474, 0.0
  %1782 = vadd.xlane.f32.xlu0 %v1781
  %v1783 = vpop.xlane.xlu0 %1782
  %v1784 = vsel %vm1513, %v1475, 0.0
  %1785 = vadd.xlane.f32.xlu0 %v1784
  %v1786 = vpop.xlane.xlu0 %1785
  %v1787 = vsel %vm1513, %v1476, 0.0
  %1788 = vadd.xlane.f32.xlu0 %v1787
  %v1789 = vpop.xlane.xlu0 %1788
  %v1790 = vsel %vm1513, %v1477, 0.0
  %1791 = vadd.xlane.f32.xlu0 %v1790
  %v1792 = vpop.xlane.xlu0 %1791
  %v1793 = vsel %vm1513, %v1478, 0.0
  %1794 = vadd.xlane.f32.xlu0 %v1793
  %v1795 = vpop.xlane.xlu0 %1794
  %v1796 = vsel %vm1513, %v1479, 0.0
  %1797 = vadd.xlane.f32.xlu0 %v1796
  %v1798 = vpop.xlane.xlu0 %1797
  %v1799 = vsel %vm1513, %v1480, 0.0
  %1800 = vadd.xlane.f32.xlu0 %v1799
  %v1801 = vpop.xlane.xlu0 %1800
  %v1802 = vsel %vm1513, %v1481, 0.0
  %1803 = vadd.xlane.f32.xlu0 %v1802
  %v1804 = vpop.xlane.xlu0 %1803
  %v1805 = vsel %vm1513, %v1482, 0.0
  %1806 = vadd.xlane.f32.xlu0 %v1805
  %v1807 = vpop.xlane.xlu0 %1806
  %v1808 = vsel %vm1513, %v1483, 0.0
  %1809 = vadd.xlane.f32.xlu0 %v1808
  %v1810 = vpop.xlane.xlu0 %1809
  %v1811 = vsel %vm1513, %v1484, 0.0
  %1812 = vadd.xlane.f32.xlu0 %v1811
  %v1813 = vpop.xlane.xlu0 %1812
  %v1814 = vsel %vm1513, %v1485, 0.0
  %1815 = vadd.xlane.f32.xlu0 %v1814
  %v1816 = vpop.xlane.xlu0 %1815
  %v1817 = vsel %vm1513, %v1486, 0.0
  %1818 = vadd.xlane.f32.xlu0 %v1817
  %v1819 = vpop.xlane.xlu0 %1818
  %v1820 = vsel %vm1513, %v1487, 0.0
  %1821 = vadd.xlane.f32.xlu0 %v1820
  %v1822 = vpop.xlane.xlu0 %1821
  %v1823 = vsel %vm1513, %v1488, 0.0
  %1824 = vadd.xlane.f32.xlu0 %v1823
  %v1825 = vpop.xlane.xlu0 %1824
  %v1826 = vsel %vm1513, %v1489, 0.0
  %1827 = vadd.xlane.f32.xlu0 %v1826
  %v1828 = vpop.xlane.xlu0 %1827
  %v1829 = vsel %vm1513, %v1490, 0.0
  %1830 = vadd.xlane.f32.xlu0 %v1829
  %v1831 = vpop.xlane.xlu0 %1830
  %v1832 = vsel %vm1513, %v1491, 0.0
  %1833 = vadd.xlane.f32.xlu0 %v1832
  %v1834 = vpop.xlane.xlu0 %1833
  %v1835 = vsel %vm1513, %v1492, 0.0
  %1836 = vadd.xlane.f32.xlu0 %v1835
  %v1837 = vpop.xlane.xlu0 %1836
  %v1838 = vsel %vm1513, %v1493, 0.0
  %1839 = vadd.xlane.f32.xlu0 %v1838
  %v1840 = vpop.xlane.xlu0 %1839
  %v1841 = vsel %vm1513, %v1494, 0.0
  %1842 = vadd.xlane.f32.xlu0 %v1841
  %v1843 = vpop.xlane.xlu0 %1842
  %v1844 = vsel %vm1513, %v1495, 0.0
  %1845 = vadd.xlane.f32.xlu0 %v1844
  %v1846 = vpop.xlane.xlu0 %1845
  %v1847 = vsel %vm1513, %v1496, 0.0
  %1848 = vadd.xlane.f32.xlu0 %v1847
  %v1849 = vpop.xlane.xlu0 %1848
  %v1850 = vsel %vm1513, %v1497, 0.0
  %1851 = vadd.xlane.f32.xlu0 %v1850
  %v1852 = vpop.xlane.xlu0 %1851
  %v1853 = vsel %vm1513, %v1498, 0.0
  %1854 = vadd.xlane.f32.xlu0 %v1853
  %v1855 = vpop.xlane.xlu0 %1854
  %v1856 = vsel %vm1513, %v1499, 0.0
  %1857 = vadd.xlane.f32.xlu0 %v1856
  %v1858 = vpop.xlane.xlu0 %1857
  %v1859 = vsel %vm1513, %v1500, 0.0
  %1860 = vadd.xlane.f32.xlu0 %v1859
  %v1861 = vpop.xlane.xlu0 %1860
  %v1862 = vsel %vm1513, %v1501, 0.0
  %1863 = vadd.xlane.f32.xlu0 %v1862
  %v1864 = vpop.xlane.xlu0 %1863
  %v1865 = vsel %vm1513, %v1502, 0.0
  %1866 = vadd.xlane.f32.xlu0 %v1865
  %v1867 = vpop.xlane.xlu0 %1866
  %v1868 = vsel %vm1513, %v1503, 0.0
  %1869 = vadd.xlane.f32.xlu0 %v1868
  %v1870 = vpop.xlane.xlu0 %1869
  %v1871 = vsel %vm1513, %v1504, 0.0
  %1872 = vadd.xlane.f32.xlu0 %v1871
  %v1873 = vpop.xlane.xlu0 %1872
  %v1874 = vsel %vm1513, %v1505, 0.0
  %1875 = vadd.xlane.f32.xlu0 %v1874
  %v1876 = vpop.xlane.xlu0 %1875
  %v1877 = vsel %vm1513, %v1506, 0.0
  %1878 = vadd.xlane.f32.xlu0 %v1877
  %v1879 = vpop.xlane.xlu0 %1878
  %v1880 = vsel %vm1513, %v1507, 0.0
  %1881 = vadd.xlane.f32.xlu0 %v1880
  %v1882 = vpop.xlane.xlu0 %1881
  %v1883 = vsel %vm1513, %v1508, 0.0
  %1884 = vadd.xlane.f32.xlu0 %v1883
  %v1885 = vpop.xlane.xlu0 %1884
  %v1886 = vsel %vm1513, %v1509, 0.0
  %1887 = vadd.xlane.f32.xlu0 %v1886
  %v1888 = vpop.xlane.xlu0 %1887
  %v1889 = vsel %vm1513, %v1510, 0.0
  %1890 = vadd.xlane.f32.xlu0 %v1889
  %v1891 = vpop.xlane.xlu0 %1890
  %v1892 = vsel %vm1513, %v1511, 0.0
  %1893 = vadd.xlane.f32.xlu0 %v1892
  %v1894 = vpop.xlane.xlu0 %1893
  %v1895 = vsel %vm1513, %v1512, 0.0
  %1896 = vadd.xlane.f32.xlu0 %v1895
  %v1897 = vpop.xlane.xlu0 %1896
  %s1898 = sld [smem:[#allocation2]]
  %v1899 = vstv %s1898
  %v1900 = vadd.f32 %v1516, %v1899
  %v1901 = vadd.f32 %v1519, %v1899
  %v1902 = vadd.f32 %v1522, %v1899
  %v1903 = vadd.f32 %v1525, %v1899
  %v1904 = vadd.f32 %v1528, %v1899
  %v1905 = vadd.f32 %v1531, %v1899
  %v1906 = vadd.f32 %v1534, %v1899
  %v1907 = vadd.f32 %v1537, %v1899
  %v1908 = vadd.f32 %v1540, %v1899
  %v1909 = vadd.f32 %v1543, %v1899
  %v1910 = vadd.f32 %v1546, %v1899
  %v1911 = vadd.f32 %v1549, %v1899
  %v1912 = vadd.f32 %v1552, %v1899
  %v1913 = vadd.f32 %v1555, %v1899
  %v1914 = vadd.f32 %v1558, %v1899
  %v1915 = vadd.f32 %v1561, %v1899
  %v1916 = vadd.f32 %v1564, %v1899
  %v1917 = vadd.f32 %v1567, %v1899
  %v1918 = vadd.f32 %v1570, %v1899
  %v1919 = vadd.f32 %v1573, %v1899
  %v1920 = vadd.f32 %v1576, %v1899
  %v1921 = vadd.f32 %v1579, %v1899
  %v1922 = vadd.f32 %v1582, %v1899
  %v1923 = vadd.f32 %v1585, %v1899
  %v1924 = vadd.f32 %v1588, %v1899
  %v1925 = vadd.f32 %v1591, %v1899
  %v1926 = vadd.f32 %v1594, %v1899
  %v1927 = vadd.f32 %v1597, %v1899
  %v1928 = vadd.f32 %v1600, %v1899
  %v1929 = vadd.f32 %v1603, %v1899
  %v1930 = vadd.f32 %v1606, %v1899
  %v1931 = vadd.f32 %v1609, %v1899
  %v1932 = vadd.f32 %v1612, %v1899
  %v1933 = vadd.f32 %v1615, %v1899
  %v1934 = vadd.f32 %v1618, %v1899
  %v1935 = vadd.f32 %v1621, %v1899
  %v1936 = vadd.f32 %v1624, %v1899
  %v1937 = vadd.f32 %v1627, %v1899
  %v1938 = vadd.f32 %v1630, %v1899
  %v1939 = vadd.f32 %v1633, %v1899
  %v1940 = vadd.f32 %v1636, %v1899
  %v1941 = vadd.f32 %v1639, %v1899
  %v1942 = vadd.f32 %v1642, %v1899
  %v1943 = vadd.f32 %v1645, %v1899
  %v1944 = vadd.f32 %v1648, %v1899
  %v1945 = vadd.f32 %v1651, %v1899
  %v1946 = vadd.f32 %v1654, %v1899
  %v1947 = vadd.f32 %v1657, %v1899
  %v1948 = vadd.f32 %v1660, %v1899
  %v1949 = vadd.f32 %v1663, %v1899
  %v1950 = vadd.f32 %v1666, %v1899
  %v1951 = vadd.f32 %v1669, %v1899
  %v1952 = vadd.f32 %v1672, %v1899
  %v1953 = vadd.f32 %v1675, %v1899
  %v1954 = vadd.f32 %v1678, %v1899
  %v1955 = vadd.f32 %v1681, %v1899
  %v1956 = vadd.f32 %v1684, %v1899
  %v1957 = vadd.f32 %v1687, %v1899
  %v1958 = vadd.f32 %v1690, %v1899
  %v1959 = vadd.f32 %v1693, %v1899
  %v1960 = vadd.f32 %v1696, %v1899
  %v1961 = vadd.f32 %v1699, %v1899
  %v1962 = vadd.f32 %v1702, %v1899
  %v1963 = vadd.f32 %v1705, %v1899
  %v1964 = vadd.f32 %v1708, %v1899
  %v1965 = vadd.f32 %v1711, %v1899
  %v1966 = vadd.f32 %v1714, %v1899
  %v1967 = vadd.f32 %v1717, %v1899
  %v1968 = vadd.f32 %v1720, %v1899
  %v1969 = vadd.f32 %v1723, %v1899
  %v1970 = vadd.f32 %v1726, %v1899
  %v1971 = vadd.f32 %v1729, %v1899
  %v1972 = vadd.f32 %v1732, %v1899
  %v1973 = vadd.f32 %v1735, %v1899
  %v1974 = vadd.f32 %v1738, %v1899
  %v1975 = vadd.f32 %v1741, %v1899
  %v1976 = vadd.f32 %v1744, %v1899
  %v1977 = vadd.f32 %v1747, %v1899
  %v1978 = vadd.f32 %v1750, %v1899
  %v1979 = vadd.f32 %v1753, %v1899
  %v1980 = vadd.f32 %v1756, %v1899
  %v1981 = vadd.f32 %v1759, %v1899
  %v1982 = vadd.f32 %v1762, %v1899
  %v1983 = vadd.f32 %v1765, %v1899
  %v1984 = vadd.f32 %v1768, %v1899
  %v1985 = vadd.f32 %v1771, %v1899
  %v1986 = vadd.f32 %v1774, %v1899
  %v1987 = vadd.f32 %v1777, %v1899
  %v1988 = vadd.f32 %v1780, %v1899
  %v1989 = vadd.f32 %v1783, %v1899
  %v1990 = vadd.f32 %v1786, %v1899
  %v1991 = vadd.f32 %v1789, %v1899
  %v1992 = vadd.f32 %v1792, %v1899
  %v1993 = vadd.f32 %v1795, %v1899
  %v1994 = vadd.f32 %v1798, %v1899
  %v1995 = vadd.f32 %v1801, %v1899
  %v1996 = vadd.f32 %v1804, %v1899
  %v1997 = vadd.f32 %v1807, %v1899
  %v1998 = vadd.f32 %v1810, %v1899
  %v1999 = vadd.f32 %v1813, %v1899
  %v2000 = vadd.f32 %v1816, %v1899
  %v2001 = vadd.f32 %v1819, %v1899
  %v2002 = vadd.f32 %v1822, %v1899
  %v2003 = vadd.f32 %v1825, %v1899
  %v2004 = vadd.f32 %v1828, %v1899
  %v2005 = vadd.f32 %v1831, %v1899
  %v2006 = vadd.f32 %v1834, %v1899
  %v2007 = vadd.f32 %v1837, %v1899
  %v2008 = vadd.f32 %v1840, %v1899
  %v2009 = vadd.f32 %v1843, %v1899
  %v2010 = vadd.f32 %v1846, %v1899
  %v2011 = vadd.f32 %v1849, %v1899
  %v2012 = vadd.f32 %v1852, %v1899
  %v2013 = vadd.f32 %v1855, %v1899
  %v2014 = vadd.f32 %v1858, %v1899
  %v2015 = vadd.f32 %v1861, %v1899
  %v2016 = vadd.f32 %v1864, %v1899
  %v2017 = vadd.f32 %v1867, %v1899
  %v2018 = vadd.f32 %v1870, %v1899
  %v2019 = vadd.f32 %v1873, %v1899
  %v2020 = vadd.f32 %v1876, %v1899
  %v2021 = vadd.f32 %v1879, %v1899
  %v2022 = vadd.f32 %v1882, %v1899
  %v2023 = vadd.f32 %v1885, %v1899
  %v2024 = vadd.f32 %v1888, %v1899
  %v2025 = vadd.f32 %v1891, %v1899
  %v2026 = vadd.f32 %v1894, %v1899
  %v2027 = vadd.f32 %v1897, %v1899
  %vm2028 = vcmask 7168
  %2029 = vst.msk [vmem:[%s5] sm:$0xff] %vm2028, %v1900
  %2030 = vst.msk [vmem:[%s5 + $0x8] sm:$0xff] %vm2028, %v1901
  %2031 = vst.msk [vmem:[%s5 + $0x10] sm:$0xff] %vm2028, %v1902
  %2032 = vst.msk [vmem:[%s5 + $0x18] sm:$0xff] %vm2028, %v1903
  %2033 = vst.msk [vmem:[%s5 + $0x20] sm:$0xff] %vm2028, %v1904
  %2034 = vst.msk [vmem:[%s5 + $0x28] sm:$0xff] %vm2028, %v1905
  %2035 = vst.msk [vmem:[%s5 + $0x30] sm:$0xff] %vm2028, %v1906
  %2036 = vst.msk [vmem:[%s5 + $0x38] sm:$0xff] %vm2028, %v1907
  %2037 = vst.msk [vmem:[%s5 + $0x40] sm:$0xff] %vm2028, %v1908
  %2038 = vst.msk [vmem:[%s5 + $0x48] sm:$0xff] %vm2028, %v1909
  %2039 = vst.msk [vmem:[%s5 + $0x50] sm:$0xff] %vm2028, %v1910
  %2040 = vst.msk [vmem:[%s5 + $0x58] sm:$0xff] %vm2028, %v1911
  %2041 = vst.msk [vmem:[%s5 + $0x60] sm:$0xff] %vm2028, %v1912
  %2042 = vst.msk [vmem:[%s5 + $0x68] sm:$0xff] %vm2028, %v1913
  %2043 = vst.msk [vmem:[%s5 + $0x70] sm:$0xff] %vm2028, %v1914
  %2044 = vst.msk [vmem:[%s5 + $0x78] sm:$0xff] %vm2028, %v1915
  %2045 = vst.msk [vmem:[%s5 + $0x80] sm:$0xff] %vm2028, %v1916
  %2046 = vst.msk [vmem:[%s5 + $0x88] sm:$0xff] %vm2028, %v1917
  %2047 = vst.msk [vmem:[%s5 + $0x90] sm:$0xff] %vm2028, %v1918
  %2048 = vst.msk [vmem:[%s5 + $0x98] sm:$0xff] %vm2028, %v1919
  %2049 = vst.msk [vmem:[%s5 + $0xa0] sm:$0xff] %vm2028, %v1920
  %2050 = vst.msk [vmem:[%s5 + $0xa8] sm:$0xff] %vm2028, %v1921
  %2051 = vst.msk [vmem:[%s5 + $0xb0] sm:$0xff] %vm2028, %v1922
  %2052 = vst.msk [vmem:[%s5 + $0xb8] sm:$0xff] %vm2028, %v1923
  %2053 = vst.msk [vmem:[%s5 + $0xc0] sm:$0xff] %vm2028, %v1924
  %2054 = vst.msk [vmem:[%s5 + $0xc8] sm:$0xff] %vm2028, %v1925
  %2055 = vst.msk [vmem:[%s5 + $0xd0] sm:$0xff] %vm2028, %v1926
  %2056 = vst.msk [vmem:[%s5 + $0xd8] sm:$0xff] %vm2028, %v1927
  %2057 = vst.msk [vmem:[%s5 + $0xe0] sm:$0xff] %vm2028, %v1928
  %2058 = vst.msk [vmem:[%s5 + $0xe8] sm:$0xff] %vm2028, %v1929
  %2059 = vst.msk [vmem:[%s5 + $0xf0] sm:$0xff] %vm2028, %v1930
  %2060 = vst.msk [vmem:[%s5 + $0xf8] sm:$0xff] %vm2028, %v1931
  %2061 = vst.msk [vmem:[%s5 + $0x100] sm:$0xff] %vm2028, %v1932
  %2062 = vst.msk [vmem:[%s5 + $0x108] sm:$0xff] %vm2028, %v1933
  %2063 = vst.msk [vmem:[%s5 + $0x110] sm:$0xff] %vm2028, %v1934
  %2064 = vst.msk [vmem:[%s5 + $0x118] sm:$0xff] %vm2028, %v1935
  %2065 = vst.msk [vmem:[%s5 + $0x120] sm:$0xff] %vm2028, %v1936
  %2066 = vst.msk [vmem:[%s5 + $0x128] sm:$0xff] %vm2028, %v1937
  %2067 = vst.msk [vmem:[%s5 + $0x130] sm:$0xff] %vm2028, %v1938
  %2068 = vst.msk [vmem:[%s5 + $0x138] sm:$0xff] %vm2028, %v1939
  %2069 = vst.msk [vmem:[%s5 + $0x140] sm:$0xff] %vm2028, %v1940
  %2070 = vst.msk [vmem:[%s5 + $0x148] sm:$0xff] %vm2028, %v1941
  %2071 = vst.msk [vmem:[%s5 + $0x150] sm:$0xff] %vm2028, %v1942
  %2072 = vst.msk [vmem:[%s5 + $0x158] sm:$0xff] %vm2028, %v1943
  %2073 = vst.msk [vmem:[%s5 + $0x160] sm:$0xff] %vm2028, %v1944
  %2074 = vst.msk [vmem:[%s5 + $0x168] sm:$0xff] %vm2028, %v1945
  %2075 = vst.msk [vmem:[%s5 + $0x170] sm:$0xff] %vm2028, %v1946
  %2076 = vst.msk [vmem:[%s5 + $0x178] sm:$0xff] %vm2028, %v1947
  %2077 = vst.msk [vmem:[%s5 + $0x180] sm:$0xff] %vm2028, %v1948
  %2078 = vst.msk [vmem:[%s5 + $0x188] sm:$0xff] %vm2028, %v1949
  %2079 = vst.msk [vmem:[%s5 + $0x190] sm:$0xff] %vm2028, %v1950
  %2080 = vst.msk [vmem:[%s5 + $0x198] sm:$0xff] %vm2028, %v1951
  %2081 = vst.msk [vmem:[%s5 + $0x1a0] sm:$0xff] %vm2028, %v1952
  %2082 = vst.msk [vmem:[%s5 + $0x1a8] sm:$0xff] %vm2028, %v1953
  %2083 = vst.msk [vmem:[%s5 + $0x1b0] sm:$0xff] %vm2028, %v1954
  %2084 = vst.msk [vmem:[%s5 + $0x1b8] sm:$0xff] %vm2028, %v1955
  %2085 = vst.msk [vmem:[%s5 + $0x1c0] sm:$0xff] %vm2028, %v1956
  %2086 = vst.msk [vmem:[%s5 + $0x1c8] sm:$0xff] %vm2028, %v1957
  %2087 = vst.msk [vmem:[%s5 + $0x1d0] sm:$0xff] %vm2028, %v1958
  %2088 = vst.msk [vmem:[%s5 + $0x1d8] sm:$0xff] %vm2028, %v1959
  %2089 = vst.msk [vmem:[%s5 + $0x1e0] sm:$0xff] %vm2028, %v1960
  %2090 = vst.msk [vmem:[%s5 + $0x1e8] sm:$0xff] %vm2028, %v1961
  %2091 = vst.msk [vmem:[%s5 + $0x1f0] sm:$0xff] %vm2028, %v1962
  %2092 = vst.msk [vmem:[%s5 + $0x1f8] sm:$0xff] %vm2028, %v1963
  %2093 = vst.msk [vmem:[%s5 + $0x200] sm:$0xff] %vm2028, %v1964
  %2094 = vst.msk [vmem:[%s5 + $0x208] sm:$0xff] %vm2028, %v1965
  %2095 = vst.msk [vmem:[%s5 + $0x210] sm:$0xff] %vm2028, %v1966
  %2096 = vst.msk [vmem:[%s5 + $0x218] sm:$0xff] %vm2028, %v1967
  %2097 = vst.msk [vmem:[%s5 + $0x220] sm:$0xff] %vm2028, %v1968
  %2098 = vst.msk [vmem:[%s5 + $0x228] sm:$0xff] %vm2028, %v1969
  %2099 = vst.msk [vmem:[%s5 + $0x230] sm:$0xff] %vm2028, %v1970
  %2100 = vst.msk [vmem:[%s5 + $0x238] sm:$0xff] %vm2028, %v1971
  %2101 = vst.msk [vmem:[%s5 + $0x240] sm:$0xff] %vm2028, %v1972
  %2102 = vst.msk [vmem:[%s5 + $0x248] sm:$0xff] %vm2028, %v1973
  %2103 = vst.msk [vmem:[%s5 + $0x250] sm:$0xff] %vm2028, %v1974
  %2104 = vst.msk [vmem:[%s5 + $0x258] sm:$0xff] %vm2028, %v1975
  %2105 = vst.msk [vmem:[%s5 + $0x260] sm:$0xff] %vm2028, %v1976
  %2106 = vst.msk [vmem:[%s5 + $0x268] sm:$0xff] %vm2028, %v1977
  %2107 = vst.msk [vmem:[%s5 + $0x270] sm:$0xff] %vm2028, %v1978
  %2108 = vst.msk [vmem:[%s5 + $0x278] sm:$0xff] %vm2028, %v1979
  %2109 = vst.msk [vmem:[%s5 + $0x280] sm:$0xff] %vm2028, %v1980
  %2110 = vst.msk [vmem:[%s5 + $0x288] sm:$0xff] %vm2028, %v1981
  %2111 = vst.msk [vmem:[%s5 + $0x290] sm:$0xff] %vm2028, %v1982
  %2112 = vst.msk [vmem:[%s5 + $0x298] sm:$0xff] %vm2028, %v1983
  %2113 = vst.msk [vmem:[%s5 + $0x2a0] sm:$0xff] %vm2028, %v1984
  %2114 = vst.msk [vmem:[%s5 + $0x2a8] sm:$0xff] %vm2028, %v1985
  %2115 = vst.msk [vmem:[%s5 + $0x2b0] sm:$0xff] %vm2028, %v1986
  %2116 = vst.msk [vmem:[%s5 + $0x2b8] sm:$0xff] %vm2028, %v1987
  %2117 = vst.msk [vmem:[%s5 + $0x2c0] sm:$0xff] %vm2028, %v1988
  %2118 = vst.msk [vmem:[%s5 + $0x2c8] sm:$0xff] %vm2028, %v1989
  %2119 = vst.msk [vmem:[%s5 + $0x2d0] sm:$0xff] %vm2028, %v1990
  %2120 = vst.msk [vmem:[%s5 + $0x2d8] sm:$0xff] %vm2028, %v1991
  %2121 = vst.msk [vmem:[%s5 + $0x2e0] sm:$0xff] %vm2028, %v1992
  %2122 = vst.msk [vmem:[%s5 + $0x2e8] sm:$0xff] %vm2028, %v1993
  %2123 = vst.msk [vmem:[%s5 + $0x2f0] sm:$0xff] %vm2028, %v1994
  %2124 = vst.msk [vmem:[%s5 + $0x2f8] sm:$0xff] %vm2028, %v1995
  %2125 = vst.msk [vmem:[%s5 + $0x300] sm:$0xff] %vm2028, %v1996
  %2126 = vst.msk [vmem:[%s5 + $0x308] sm:$0xff] %vm2028, %v1997
  %2127 = vst.msk [vmem:[%s5 + $0x310] sm:$0xff] %vm2028, %v1998
  %2128 = vst.msk [vmem:[%s5 + $0x318] sm:$0xff] %vm2028, %v1999
  %2129 = vst.msk [vmem:[%s5 + $0x320] sm:$0xff] %vm2028, %v2000
  %2130 = vst.msk [vmem:[%s5 + $0x328] sm:$0xff] %vm2028, %v2001
  %2131 = vst.msk [vmem:[%s5 + $0x330] sm:$0xff] %vm2028, %v2002
  %2132 = vst.msk [vmem:[%s5 + $0x338] sm:$0xff] %vm2028, %v2003
  %2133 = vst.msk [vmem:[%s5 + $0x340] sm:$0xff] %vm2028, %v2004
  %2134 = vst.msk [vmem:[%s5 + $0x348] sm:$0xff] %vm2028, %v2005
  %2135 = vst.msk [vmem:[%s5 + $0x350] sm:$0xff] %vm2028, %v2006
  %2136 = vst.msk [vmem:[%s5 + $0x358] sm:$0xff] %vm2028, %v2007
  %2137 = vst.msk [vmem:[%s5 + $0x360] sm:$0xff] %vm2028, %v2008
  %2138 = vst.msk [vmem:[%s5 + $0x368] sm:$0xff] %vm2028, %v2009
  %2139 = vst.msk [vmem:[%s5 + $0x370] sm:$0xff] %vm2028, %v2010
  %2140 = vst.msk [vmem:[%s5 + $0x378] sm:$0xff] %vm2028, %v2011
  %2141 = vst.msk [vmem:[%s5 + $0x380] sm:$0xff] %vm2028, %v2012
  %2142 = vst.msk [vmem:[%s5 + $0x388] sm:$0xff] %vm2028, %v2013
  %2143 = vst.msk [vmem:[%s5 + $0x390] sm:$0xff] %vm2028, %v2014
  %2144 = vst.msk [vmem:[%s5 + $0x398] sm:$0xff] %vm2028, %v2015
  %2145 = vst.msk [vmem:[%s5 + $0x3a0] sm:$0xff] %vm2028, %v2016
  %2146 = vst.msk [vmem:[%s5 + $0x3a8] sm:$0xff] %vm2028, %v2017
  %2147 = vst.msk [vmem:[%s5 + $0x3b0] sm:$0xff] %vm2028, %v2018
  %2148 = vst.msk [vmem:[%s5 + $0x3b8] sm:$0xff] %vm2028, %v2019
  %2149 = vst.msk [vmem:[%s5 + $0x3c0] sm:$0xff] %vm2028, %v2020
  %2150 = vst.msk [vmem:[%s5 + $0x3c8] sm:$0xff] %vm2028, %v2021
  %2151 = vst.msk [vmem:[%s5 + $0x3d0] sm:$0xff] %vm2028, %v2022
  %2152 = vst.msk [vmem:[%s5 + $0x3d8] sm:$0xff] %vm2028, %v2023
  %2153 = vst.msk [vmem:[%s5 + $0x3e0] sm:$0xff] %vm2028, %v2024
  %2154 = vst.msk [vmem:[%s5 + $0x3e8] sm:$0xff] %vm2028, %v2025
  %2155 = vst.msk [vmem:[%s5 + $0x3f0] sm:$0xff] %vm2028, %v2026
  %2156 = vst.msk [vmem:[%s5 + $0x3f8] sm:$0xff] %vm2028, %v2027
  // Predicated region
  $region22: #{tpu_custom_call.1} parent=0 // pred_check
    _
  $region23: #{tpu_custom_call.1} parent=0 // pred_check_branch
    %2158 = sbr.rel (0) target = $region25
  $region24: #{tpu_custom_call.1} parent=0 // pred_region
    _
  $region25: #{tpu_custom_call.1} parent=0 // pred_fallthru
    _
  // Predicated region
  $region26: #{tpu_custom_call.1} parent=0 // pred_check
    _
  $region27: #{tpu_custom_call.1} parent=0 // pred_check_branch
    %2160 = sbr.rel (0) target = $region29
  $region28: #{tpu_custom_call.1} parent=0 // pred_region
    _
  $region29: #{tpu_custom_call.1} parent=0 // pred_fallthru
    _

</llo_original>
